<compile_context>
chip_gen: v5e
topology: v5e:2x2
jax: 0.10.0
libtpu: 0.0.40
codegen_flags: <defaults>
</compile_context>

<pallas_src>
import functools

import numpy as np
import jax
import jax.numpy as jnp
from jax.experimental import pallas as pl
from jax.experimental.pallas import tpu as pltpu


def bgru_kernel(xc_ref, win_ref, whh_ref, bhn_ref, wout_ref, out_ref,
                gi_s, h_s, *, T, Bp, HG):
    # ---- Phase 1: fused input projection (both directions, all gates, all t).
    # Biases are folded into the last rows of win via the ones column in xc.
    gi_s[...] = jnp.dot(xc_ref[...], win_ref[...],
                        preferred_element_type=jnp.float32)

    # Loop-invariant loads hoisted out of the recurrence.
    whh = whh_ref[...]          # (HG, 3*HG) block-diagonal fwd/bwd hidden weights
    bhn = bhn_ref[...]          # (Bp, HG)   bhh_n, pre-broadcast in the wrapper

    # ---- Phase 2: serial recurrence, statically unrolled.
    # Fused state h = [h_fwd | h_bwd | pad] (Bp, HG). Step t advances the
    # forward direction at time t and the backward direction at time T-1-t
    # (the wrapper assembled gi accordingly), so both directions share ONE
    # block-diagonal hidden-hidden matmul per step.
    h = jnp.zeros((Bp, HG), jnp.float32)
    for t in range(T):
        gi = gi_s[pl.ds(t * Bp, Bp), :]                             # (Bp, 3*HG)
        gh = jnp.dot(h, whh, preferred_element_type=jnp.float32)    # (Bp, 3*HG)
        rz = jax.nn.sigmoid(gi[:, 0:2 * HG] + gh[:, 0:2 * HG])      # tile-aligned
        r = rz[:, 0:HG]
        z = rz[:, HG:2 * HG]
        n = jnp.tanh(gi[:, 2 * HG:3 * HG] + r * (gh[:, 2 * HG:3 * HG] + bhn))
        h = (1.0 - z) * n + z * h
        h_s[pl.ds(t * Bp, Bp), :] = h                               # aligned store

    # ---- Phase 3: Linear head once, after the loop.
    #   column 0: forward head output for time t       (stored at step row t)
    #   column 1: backward head output for time T-1-t  (un-reversed in wrapper)
    out_ref[...] = jnp.dot(h_s[...], wout_ref[...],
                           preferred_element_type=jnp.float32)


def _round_up(x, m):
    return ((x + m - 1) // m) * m


def bgru_forward(x, params):
    """x: (B, T, Din) float32 -> (B, T, 1) float32 (matches torch BGRU forward)."""
    B, T, Din = x.shape
    H = params["whh_f"].shape[1]
    f32 = jnp.float32

    Bp = _round_up(max(B, 8), 8)          # sublane-aligned batch
    HG = _round_up(2 * H, 128)            # fused [fwd|bwd] gate width, lane-tile padded
    G3 = 3 * HG
    Kin = _round_up(2 * Din + 1, 8)       # input-projection contraction dim

    zA = lambda r, c: jnp.zeros((r, c), f32)

    # ---- Inputs: time-major, batch zero-padded to Bp, fwd/rev concatenated on
    # the lane axis plus a ones column for the folded bias.
    xt = jnp.transpose(x, (1, 0, 2))                      # (T, B, Din)
    xt = jnp.pad(xt, ((0, 0), (0, Bp - B), (0, 0)))       # (T, Bp, Din)
    x_fwd = xt.reshape(T * Bp, Din)
    x_rev = xt[::-1].reshape(T * Bp, Din)                 # row t holds time T-1-t
    xc = jnp.concatenate([x_fwd, x_rev, jnp.ones((T * Bp, 1), f32)], axis=1)
    xc = jnp.pad(xc, ((0, 0), (0, Kin - (2 * Din + 1))))  # (T*Bp, Kin)

    # ---- Fused input-projection weights: per gate g, a 128-lane tile with
    # lanes [0:H]=forward, [H:2H]=backward, rest zero.  Rows: [x_fwd | x_rev |
    # bias | zero-pad].  Bias row = bih+bhh for r/z, bih only for n.
    def in_cols(g):
        wf, wb = params["wih_f"][g], params["wih_b"][g]                 # (Din, H)
        bf = params["bih_f"][g] + (params["bhh_f"][g] if g < 2 else 0.0)  # (1, H)
        bb = params["bih_b"][g] + (params["bhh_b"][g] if g < 2 else 0.0)
        top = jnp.concatenate([wf, zA(Din, H)], axis=1)
        mid = jnp.concatenate([zA(Din, H), wb], axis=1)
        bot = jnp.concatenate([bf, bb], axis=1)
        col = jnp.concatenate([top, mid, bot], axis=0)                  # (2Din+1, 2H)
        return jnp.concatenate([col, zA(2 * Din + 1, HG - 2 * H)], axis=1)

    win = jnp.concatenate([in_cols(0), in_cols(1), in_cols(2)], axis=1)  # (2Din+1, 3HG)
    win = jnp.pad(win, ((0, Kin - (2 * Din + 1)), (0, 0)))               # (Kin, 3HG)

    # ---- Block-diagonal hidden-hidden weights: rows = fused state lanes.
    def hh_cols(g):
        wf, wb = params["whh_f"][g], params["whh_b"][g]                  # (H, H)
        top = jnp.concatenate([wf, zA(H, H)], axis=1)
        mid = jnp.concatenate([zA(H, H), wb], axis=1)
        col = jnp.concatenate([top, mid, zA(HG - 2 * H, 2 * H)], axis=0)  # (HG, 2H)
        return jnp.concatenate([col, zA(HG, HG - 2 * H)], axis=1)         # (HG, HG)

    whh = jnp.concatenate([hh_cols(0), hh_cols(1), hh_cols(2)], axis=1)   # (HG, 3HG)

    # bhh_n stays inside r * (gh_n + bhn); pre-broadcast once (hoisted out of loop).
    bhn = jnp.concatenate([params["bhh_f"][2], params["bhh_b"][2],
                           zA(1, HG - 2 * H)], axis=1)                    # (1, HG)
    bhn = jnp.broadcast_to(bhn, (Bp, HG))

    # ---- Head weights: col 0 = forward wlin, col 1 = backward wlin.
    wout = jnp.concatenate([
        jnp.concatenate([params["wlin"][0], zA(H, 1)], axis=1),
        jnp.concatenate([zA(H, 1), params["wlin"][1]], axis=1),
        zA(HG - 2 * H, 2),
    ], axis=0)                                                            # (HG, 2)

    vmem = pl.BlockSpec(memory_space=pltpu.MemorySpace.VMEM)
    kernel = functools.partial(bgru_kernel, T=T, Bp=Bp, HG=HG)

    y2 = pl.pallas_call(
        kernel,
        out_shape=jax.ShapeDtypeStruct((T * Bp, 2), jnp.float32),
        in_specs=[vmem] * 5,
        out_specs=vmem,
        scratch_shapes=[
            pltpu.VMEM((T * Bp, G3), jnp.float32),   # fused gate pre-activations
            pltpu.VMEM((T * Bp, HG), jnp.float32),   # fused hidden states
        ],
    )(xc, win, whh, bhn, wout)

    # Wrapper-side reassembly: forward column is already time-major; the
    # backward column at step t corresponds to time T-1-t -> flip it.
    y2 = y2.reshape(T, Bp, 2)
    y = y2[:, :B, 0] + y2[::-1, :B, 1] + params["blin"][0]               # (T, B)
    return jnp.transpose(y, (1, 0))[..., None]                           # (B, T, 1)


def init_params(key, din, h):
    """Deterministic synthetic params, uniform(-1/sqrt(h), 1/sqrt(h)) like torch."""
    k = 1.0 / np.sqrt(h)
    names_shapes = [
        ("wih_f", (3, din, h)), ("whh_f", (3, h, h)),
        ("bih_f", (3, 1, h)),   ("bhh_f", (3, 1, h)),
        ("wih_b", (3, din, h)), ("whh_b", (3, h, h)),
        ("bih_b", (3, 1, h)),   ("bhh_b", (3, 1, h)),
        ("wlin",  (2, h, 1)),   ("blin",  (1,)),
    ]
    keys = jax.random.split(key, len(names_shapes))
    return {
        name: jax.random.uniform(kk, shape, jnp.float32, minval=-k, maxval=k)
        for kk, (name, shape) in zip(keys, names_shapes)
    }


def bgru_reference(x, p):
    """Pure-JAX reference mirroring torch.nn.GRU(bidirectional=True) + Linear."""
    B, T, Din = x.shape
    H = p["whh_f"].shape[1]

    def cell(x_t, h, wih, whh, bih, bhh):
        r = jax.nn.sigmoid(x_t @ wih[0] + bih[0] + h @ whh[0] + bhh[0])
        z = jax.nn.sigmoid(x_t @ wih[1] + bih[1] + h @ whh[1] + bhh[1])
        n = jnp.tanh(x_t @ wih[2] + bih[2] + r * (h @ whh[2] + bhh[2]))
        return (1.0 - z) * n + z * h

    def run_dir(xs, wih, whh, bih, bhh):
        def step(h, x_t):
            h = cell(x_t, h, wih, whh, bih, bhh)
            return h, h
        _, hs = jax.lax.scan(step, jnp.zeros((B, H), jnp.float32), xs)
        return hs  # (T, B, H)

    xt = jnp.transpose(x, (1, 0, 2))
    hf = run_dir(xt, p["wih_f"], p["whh_f"], p["bih_f"], p["bhh_f"])
    hb = run_dir(xt[::-1], p["wih_b"], p["whh_b"], p["bih_b"], p["bhh_b"])[::-1]
    hcat = jnp.concatenate([hf, hb], axis=-1)                       # (T, B, 2H)
    wlin = jnp.concatenate([p["wlin"][0], p["wlin"][1]], axis=0)    # (2H, 1)
    y = hcat @ wlin + p["blin"][0]
    return jnp.transpose(y, (1, 0, 2))


if __name__ == "__main__":
    # BGRU(d=4, de=2, h_size=32, bidirectional=True) -> input feature dim 8.
    B, T = 2, 8
    d, de, h_size = 4, 2, 32
    din = d + 2 * de

    key = jax.random.PRNGKey(0)
    kx, kp = jax.random.split(key)
    x = jax.random.normal(kx, (B, T, din), jnp.float32)
    params = init_params(kp, din, h_size)

    out = jax.block_until_ready(bgru_forward(x, params))
    with jax.default_matmul_precision("highest"):
        ref = jax.block_until_ready(bgru_reference(x, params))

    assert out.shape == (B, T, 1)
    # Tolerance covers possible reduced-precision MXU passes for f32 matmuls.
    np.testing.assert_allclose(np.asarray(out), np.asarray(ref), rtol=2e-2, atol=2e-2)
    print("KERNEL_OK")
</pallas_src>

<mosaic_0001>
module attributes {stable_mosaic.version = 11 : i64} {
  func.func @bgru_kernel(%arg0: memref<64x24xf32, #tpu.memory_space<vmem>>, %arg1: memref<24x384xf32, #tpu.memory_space<vmem>>, %arg2: memref<128x384xf32, #tpu.memory_space<vmem>>, %arg3: memref<8x128xf32, #tpu.memory_space<vmem>>, %arg4: memref<128x2xf32, #tpu.memory_space<vmem>>, %arg5: memref<64x2xf32, #tpu.memory_space<vmem>>, %arg6: memref<64x384xf32, #tpu.memory_space<vmem>>, %arg7: memref<64x128xf32, #tpu.memory_space<vmem>>) attributes {dimension_semantics = [], scalar_prefetch = 0 : i64, scratch_operands = 2 : i64, tpu.core_type = #tpu.core_type<tc>} {
    %c0 = arith.constant 0 : index
    %c0_0 = arith.constant 0 : index
    %0 = vector.load %arg0[%c0, %c0_0] : memref<64x24xf32, #tpu.memory_space<vmem>>, vector<64x24xf32>
    %c0_1 = arith.constant 0 : index
    %c0_2 = arith.constant 0 : index
    %1 = vector.load %arg1[%c0_1, %c0_2] : memref<24x384xf32, #tpu.memory_space<vmem>>, vector<24x384xf32>
    %cst = arith.constant dense<0.000000e+00> : vector<64x384xf32>
    %2 = tpu.matmul %0, %1, %cst {dimension_numbers = #tpu.dot_dimension_numbers<[1], [0], [0], [1], [0, 0, 1, 1], [], []>} : vector<64x24xf32>, vector<24x384xf32>, vector<64x384xf32> -> vector<64x384xf32>
    %c0_3 = arith.constant 0 : index
    %c0_4 = arith.constant 0 : index
    %3 = vector.load %arg6[%c0_3, %c0_4] : memref<64x384xf32, #tpu.memory_space<vmem>>, vector<64x384xf32>
    tpu.vector_store %arg6[%c0_3, %c0_4], %2 {strides = array<i32>} : memref<64x384xf32, #tpu.memory_space<vmem>>, vector<64x384xf32>,
    %c0_5 = arith.constant 0 : index
    %c0_6 = arith.constant 0 : index
    %4 = vector.load %arg2[%c0_5, %c0_6] : memref<128x384xf32, #tpu.memory_space<vmem>>, vector<128x384xf32>
    %c0_7 = arith.constant 0 : index
    %c0_8 = arith.constant 0 : index
    %5 = vector.load %arg3[%c0_7, %c0_8] : memref<8x128xf32, #tpu.memory_space<vmem>>, vector<8x128xf32>
    %cst_9 = arith.constant 0.000000e+00 : f32
    %6 = vector.broadcast %cst_9 : f32 to vector<8x128xf32>
    %c0_10 = arith.constant 0 : index
    %c0_11 = arith.constant 0 : index
    %7 = vector.load %arg6[%c0_10, %c0_11] : memref<64x384xf32, #tpu.memory_space<vmem>>, vector<8x384xf32>
    %cst_12 = arith.constant dense<0.000000e+00> : vector<8x384xf32>
    %8 = tpu.matmul %6, %4, %cst_12 {dimension_numbers = #tpu.dot_dimension_numbers<[1], [0], [0], [1], [0, 0, 1, 1], [], []>} : vector<8x128xf32>, vector<128x384xf32>, vector<8x384xf32> -> vector<8x384xf32>
    %9 = vector.extract_strided_slice %7 {offsets = [0, 0], sizes = [8, 256], strides = [1, 1]} : vector<8x384xf32> to vector<8x256xf32>
    %10 = vector.extract_strided_slice %8 {offsets = [0, 0], sizes = [8, 256], strides = [1, 1]} : vector<8x384xf32> to vector<8x256xf32>
    %11 = arith.addf %9, %10 : vector<8x256xf32>
    %12 = arith.negf %11 : vector<8x256xf32>
    %13 = math.exp %12 : vector<8x256xf32>
    %cst_13 = arith.constant 1.000000e+00 : f32
    %14 = vector.broadcast %cst_13 : f32 to vector<8x256xf32>
    %15 = arith.addf %14, %13 : vector<8x256xf32>
    %16 = arith.divf %14, %15 : vector<8x256xf32>
    %17 = vector.extract_strided_slice %16 {offsets = [0, 0], sizes = [8, 128], strides = [1, 1]} : vector<8x256xf32> to vector<8x128xf32>
    %18 = vector.extract_strided_slice %16 {offsets = [0, 128], sizes = [8, 128], strides = [1, 1]} : vector<8x256xf32> to vector<8x128xf32>
    %19 = vector.extract_strided_slice %7 {offsets = [0, 256], sizes = [8, 128], strides = [1, 1]} : vector<8x384xf32> to vector<8x128xf32>
    %20 = vector.extract_strided_slice %8 {offsets = [0, 256], sizes = [8, 128], strides = [1, 1]} : vector<8x384xf32> to vector<8x128xf32>
    %21 = arith.addf %20, %5 : vector<8x128xf32>
    %22 = arith.mulf %17, %21 : vector<8x128xf32>
    %23 = arith.addf %19, %22 : vector<8x128xf32>
    %24 = math.tanh %23 : vector<8x128xf32>
    %cst_14 = arith.constant 1.000000e+00 : f32
    %25 = vector.broadcast %cst_14 : f32 to vector<8x128xf32>
    %26 = arith.subf %25, %18 : vector<8x128xf32>
    %27 = arith.mulf %26, %24 : vector<8x128xf32>
    %28 = arith.mulf %18, %6 : vector<8x128xf32>
    %29 = arith.addf %27, %28 : vector<8x128xf32>
    %c0_15 = arith.constant 0 : index
    %c0_16 = arith.constant 0 : index
    %30 = vector.load %arg7[%c0_15, %c0_16] : memref<64x128xf32, #tpu.memory_space<vmem>>, vector<8x128xf32>
    tpu.vector_store %arg7[%c0_15, %c0_16], %29 {strides = array<i32>} : memref<64x128xf32, #tpu.memory_space<vmem>>, vector<8x128xf32>,
    %c8 = arith.constant 8 : index
    %c0_17 = arith.constant 0 : index
    %31 = vector.load %arg6[%c8, %c0_17] : memref<64x384xf32, #tpu.memory_space<vmem>>, vector<8x384xf32>
    %cst_18 = arith.constant dense<0.000000e+00> : vector<8x384xf32>
    %32 = tpu.matmul %29, %4, %cst_18 {dimension_numbers = #tpu.dot_dimension_numbers<[1], [0], [0], [1], [0, 0, 1, 1], [], []>} : vector<8x128xf32>, vector<128x384xf32>, vector<8x384xf32> -> vector<8x384xf32>
    %33 = vector.extract_strided_slice %31 {offsets = [0, 0], sizes = [8, 256], strides = [1, 1]} : vector<8x384xf32> to vector<8x256xf32>
    %34 = vector.extract_strided_slice %32 {offsets = [0, 0], sizes = [8, 256], strides = [1, 1]} : vector<8x384xf32> to vector<8x256xf32>
    %35 = arith.addf %33, %34 : vector<8x256xf32>
    %36 = arith.negf %35 : vector<8x256xf32>
    %37 = math.exp %36 : vector<8x256xf32>
    %cst_19 = arith.constant 1.000000e+00 : f32
    %38 = vector.broadcast %cst_19 : f32 to vector<8x256xf32>
    %39 = arith.addf %38, %37 : vector<8x256xf32>
    %40 = arith.divf %38, %39 : vector<8x256xf32>
    %41 = vector.extract_strided_slice %40 {offsets = [0, 0], sizes = [8, 128], strides = [1, 1]} : vector<8x256xf32> to vector<8x128xf32>
    %42 = vector.extract_strided_slice %40 {offsets = [0, 128], sizes = [8, 128], strides = [1, 1]} : vector<8x256xf32> to vector<8x128xf32>
    %43 = vector.extract_strided_slice %31 {offsets = [0, 256], sizes = [8, 128], strides = [1, 1]} : vector<8x384xf32> to vector<8x128xf32>
    %44 = vector.extract_strided_slice %32 {offsets = [0, 256], sizes = [8, 128], strides = [1, 1]} : vector<8x384xf32> to vector<8x128xf32>
    %45 = arith.addf %44, %5 : vector<8x128xf32>
    %46 = arith.mulf %41, %45 : vector<8x128xf32>
    %47 = arith.addf %43, %46 : vector<8x128xf32>
    %48 = math.tanh %47 : vector<8x128xf32>
    %cst_20 = arith.constant 1.000000e+00 : f32
    %49 = vector.broadcast %cst_20 : f32 to vector<8x128xf32>
    %50 = arith.subf %49, %42 : vector<8x128xf32>
    %51 = arith.mulf %50, %48 : vector<8x128xf32>
    %52 = arith.mulf %42, %29 : vector<8x128xf32>
    %53 = arith.addf %51, %52 : vector<8x128xf32>
    %c8_21 = arith.constant 8 : index
    %c0_22 = arith.constant 0 : index
    %54 = vector.load %arg7[%c8_21, %c0_22] : memref<64x128xf32, #tpu.memory_space<vmem>>, vector<8x128xf32>
    tpu.vector_store %arg7[%c8_21, %c0_22], %53 {strides = array<i32>} : memref<64x128xf32, #tpu.memory_space<vmem>>, vector<8x128xf32>,
    %c16 = arith.constant 16 : index
    %c0_23 = arith.constant 0 : index
    %55 = vector.load %arg6[%c16, %c0_23] : memref<64x384xf32, #tpu.memory_space<vmem>>, vector<8x384xf32>
    %cst_24 = arith.constant dense<0.000000e+00> : vector<8x384xf32>
    %56 = tpu.matmul %53, %4, %cst_24 {dimension_numbers = #tpu.dot_dimension_numbers<[1], [0], [0], [1], [0, 0, 1, 1], [], []>} : vector<8x128xf32>, vector<128x384xf32>, vector<8x384xf32> -> vector<8x384xf32>
    %57 = vector.extract_strided_slice %55 {offsets = [0, 0], sizes = [8, 256], strides = [1, 1]} : vector<8x384xf32> to vector<8x256xf32>
    %58 = vector.extract_strided_slice %56 {offsets = [0, 0], sizes = [8, 256], strides = [1, 1]} : vector<8x384xf32> to vector<8x256xf32>
    %59 = arith.addf %57, %58 : vector<8x256xf32>
    %60 = arith.negf %59 : vector<8x256xf32>
    %61 = math.exp %60 : vector<8x256xf32>
    %cst_25 = arith.constant 1.000000e+00 : f32
    %62 = vector.broadcast %cst_25 : f32 to vector<8x256xf32>
    %63 = arith.addf %62, %61 : vector<8x256xf32>
    %64 = arith.divf %62, %63 : vector<8x256xf32>
    %65 = vector.extract_strided_slice %64 {offsets = [0, 0], sizes = [8, 128], strides = [1, 1]} : vector<8x256xf32> to vector<8x128xf32>
    %66 = vector.extract_strided_slice %64 {offsets = [0, 128], sizes = [8, 128], strides = [1, 1]} : vector<8x256xf32> to vector<8x128xf32>
    %67 = vector.extract_strided_slice %55 {offsets = [0, 256], sizes = [8, 128], strides = [1, 1]} : vector<8x384xf32> to vector<8x128xf32>
    %68 = vector.extract_strided_slice %56 {offsets = [0, 256], sizes = [8, 128], strides = [1, 1]} : vector<8x384xf32> to vector<8x128xf32>
    %69 = arith.addf %68, %5 : vector<8x128xf32>
    %70 = arith.mulf %65, %69 : vector<8x128xf32>
    %71 = arith.addf %67, %70 : vector<8x128xf32>
    %72 = math.tanh %71 : vector<8x128xf32>
    %cst_26 = arith.constant 1.000000e+00 : f32
    %73 = vector.broadcast %cst_26 : f32 to vector<8x128xf32>
    %74 = arith.subf %73, %66 : vector<8x128xf32>
    %75 = arith.mulf %74, %72 : vector<8x128xf32>
    %76 = arith.mulf %66, %53 : vector<8x128xf32>
    %77 = arith.addf %75, %76 : vector<8x128xf32>
    %c16_27 = arith.constant 16 : index
    %c0_28 = arith.constant 0 : index
    %78 = vector.load %arg7[%c16_27, %c0_28] : memref<64x128xf32, #tpu.memory_space<vmem>>, vector<8x128xf32>
    tpu.vector_store %arg7[%c16_27, %c0_28], %77 {strides = array<i32>} : memref<64x128xf32, #tpu.memory_space<vmem>>, vector<8x128xf32>,
    %c24 = arith.constant 24 : index
    %c0_29 = arith.constant 0 : index
    %79 = vector.load %arg6[%c24, %c0_29] : memref<64x384xf32, #tpu.memory_space<vmem>>, vector<8x384xf32>
    %cst_30 = arith.constant dense<0.000000e+00> : vector<8x384xf32>
    %80 = tpu.matmul %77, %4, %cst_30 {dimension_numbers = #tpu.dot_dimension_numbers<[1], [0], [0], [1], [0, 0, 1, 1], [], []>} : vector<8x128xf32>, vector<128x384xf32>, vector<8x384xf32> -> vector<8x384xf32>
    %81 = vector.extract_strided_slice %79 {offsets = [0, 0], sizes = [8, 256], strides = [1, 1]} : vector<8x384xf32> to vector<8x256xf32>
    %82 = vector.extract_strided_slice %80 {offsets = [0, 0], sizes = [8, 256], strides = [1, 1]} : vector<8x384xf32> to vector<8x256xf32>
    %83 = arith.addf %81, %82 : vector<8x256xf32>
    %84 = arith.negf %83 : vector<8x256xf32>
    %85 = math.exp %84 : vector<8x256xf32>
    %cst_31 = arith.constant 1.000000e+00 : f32
    %86 = vector.broadcast %cst_31 : f32 to vector<8x256xf32>
    %87 = arith.addf %86, %85 : vector<8x256xf32>
    %88 = arith.divf %86, %87 : vector<8x256xf32>
    %89 = vector.extract_strided_slice %88 {offsets = [0, 0], sizes = [8, 128], strides = [1, 1]} : vector<8x256xf32> to vector<8x128xf32>
    %90 = vector.extract_strided_slice %88 {offsets = [0, 128], sizes = [8, 128], strides = [1, 1]} : vector<8x256xf32> to vector<8x128xf32>
    %91 = vector.extract_strided_slice %79 {offsets = [0, 256], sizes = [8, 128], strides = [1, 1]} : vector<8x384xf32> to vector<8x128xf32>
    %92 = vector.extract_strided_slice %80 {offsets = [0, 256], sizes = [8, 128], strides = [1, 1]} : vector<8x384xf32> to vector<8x128xf32>
    %93 = arith.addf %92, %5 : vector<8x128xf32>
    %94 = arith.mulf %89, %93 : vector<8x128xf32>
    %95 = arith.addf %91, %94 : vector<8x128xf32>
    %96 = math.tanh %95 : vector<8x128xf32>
    %cst_32 = arith.constant 1.000000e+00 : f32
    %97 = vector.broadcast %cst_32 : f32 to vector<8x128xf32>
    %98 = arith.subf %97, %90 : vector<8x128xf32>
    %99 = arith.mulf %98, %96 : vector<8x128xf32>
    %100 = arith.mulf %90, %77 : vector<8x128xf32>
    %101 = arith.addf %99, %100 : vector<8x128xf32>
    %c24_33 = arith.constant 24 : index
    %c0_34 = arith.constant 0 : index
    %102 = vector.load %arg7[%c24_33, %c0_34] : memref<64x128xf32, #tpu.memory_space<vmem>>, vector<8x128xf32>
    tpu.vector_store %arg7[%c24_33, %c0_34], %101 {strides = array<i32>} : memref<64x128xf32, #tpu.memory_space<vmem>>, vector<8x128xf32>,
    %c32 = arith.constant 32 : index
    %c0_35 = arith.constant 0 : index
    %103 = vector.load %arg6[%c32, %c0_35] : memref<64x384xf32, #tpu.memory_space<vmem>>, vector<8x384xf32>
    %cst_36 = arith.constant dense<0.000000e+00> : vector<8x384xf32>
    %104 = tpu.matmul %101, %4, %cst_36 {dimension_numbers = #tpu.dot_dimension_numbers<[1], [0], [0], [1], [0, 0, 1, 1], [], []>} : vector<8x128xf32>, vector<128x384xf32>, vector<8x384xf32> -> vector<8x384xf32>
    %105 = vector.extract_strided_slice %103 {offsets = [0, 0], sizes = [8, 256], strides = [1, 1]} : vector<8x384xf32> to vector<8x256xf32>
    %106 = vector.extract_strided_slice %104 {offsets = [0, 0], sizes = [8, 256], strides = [1, 1]} : vector<8x384xf32> to vector<8x256xf32>
    %107 = arith.addf %105, %106 : vector<8x256xf32>
    %108 = arith.negf %107 : vector<8x256xf32>
    %109 = math.exp %108 : vector<8x256xf32>
    %cst_37 = arith.constant 1.000000e+00 : f32
    %110 = vector.broadcast %cst_37 : f32 to vector<8x256xf32>
    %111 = arith.addf %110, %109 : vector<8x256xf32>
    %112 = arith.divf %110, %111 : vector<8x256xf32>
    %113 = vector.extract_strided_slice %112 {offsets = [0, 0], sizes = [8, 128], strides = [1, 1]} : vector<8x256xf32> to vector<8x128xf32>
    %114 = vector.extract_strided_slice %112 {offsets = [0, 128], sizes = [8, 128], strides = [1, 1]} : vector<8x256xf32> to vector<8x128xf32>
    %115 = vector.extract_strided_slice %103 {offsets = [0, 256], sizes = [8, 128], strides = [1, 1]} : vector<8x384xf32> to vector<8x128xf32>
    %116 = vector.extract_strided_slice %104 {offsets = [0, 256], sizes = [8, 128], strides = [1, 1]} : vector<8x384xf32> to vector<8x128xf32>
    %117 = arith.addf %116, %5 : vector<8x128xf32>
    %118 = arith.mulf %113, %117 : vector<8x128xf32>
    %119 = arith.addf %115, %118 : vector<8x128xf32>
    %120 = math.tanh %119 : vector<8x128xf32>
    %cst_38 = arith.constant 1.000000e+00 : f32
    %121 = vector.broadcast %cst_38 : f32 to vector<8x128xf32>
    %122 = arith.subf %121, %114 : vector<8x128xf32>
    %123 = arith.mulf %122, %120 : vector<8x128xf32>
    %124 = arith.mulf %114, %101 : vector<8x128xf32>
    %125 = arith.addf %123, %124 : vector<8x128xf32>
    %c32_39 = arith.constant 32 : index
    %c0_40 = arith.constant 0 : index
    %126 = vector.load %arg7[%c32_39, %c0_40] : memref<64x128xf32, #tpu.memory_space<vmem>>, vector<8x128xf32>
    tpu.vector_store %arg7[%c32_39, %c0_40], %125 {strides = array<i32>} : memref<64x128xf32, #tpu.memory_space<vmem>>, vector<8x128xf32>,
    %c40 = arith.constant 40 : index
    %c0_41 = arith.constant 0 : index
    %127 = vector.load %arg6[%c40, %c0_41] : memref<64x384xf32, #tpu.memory_space<vmem>>, vector<8x384xf32>
    %cst_42 = arith.constant dense<0.000000e+00> : vector<8x384xf32>
    %128 = tpu.matmul %125, %4, %cst_42 {dimension_numbers = #tpu.dot_dimension_numbers<[1], [0], [0], [1], [0, 0, 1, 1], [], []>} : vector<8x128xf32>, vector<128x384xf32>, vector<8x384xf32> -> vector<8x384xf32>
    %129 = vector.extract_strided_slice %127 {offsets = [0, 0], sizes = [8, 256], strides = [1, 1]} : vector<8x384xf32> to vector<8x256xf32>
    %130 = vector.extract_strided_slice %128 {offsets = [0, 0], sizes = [8, 256], strides = [1, 1]} : vector<8x384xf32> to vector<8x256xf32>
    %131 = arith.addf %129, %130 : vector<8x256xf32>
    %132 = arith.negf %131 : vector<8x256xf32>
    %133 = math.exp %132 : vector<8x256xf32>
    %cst_43 = arith.constant 1.000000e+00 : f32
    %134 = vector.broadcast %cst_43 : f32 to vector<8x256xf32>
    %135 = arith.addf %134, %133 : vector<8x256xf32>
    %136 = arith.divf %134, %135 : vector<8x256xf32>
    %137 = vector.extract_strided_slice %136 {offsets = [0, 0], sizes = [8, 128], strides = [1, 1]} : vector<8x256xf32> to vector<8x128xf32>
    %138 = vector.extract_strided_slice %136 {offsets = [0, 128], sizes = [8, 128], strides = [1, 1]} : vector<8x256xf32> to vector<8x128xf32>
    %139 = vector.extract_strided_slice %127 {offsets = [0, 256], sizes = [8, 128], strides = [1, 1]} : vector<8x384xf32> to vector<8x128xf32>
    %140 = vector.extract_strided_slice %128 {offsets = [0, 256], sizes = [8, 128], strides = [1, 1]} : vector<8x384xf32> to vector<8x128xf32>
    %141 = arith.addf %140, %5 : vector<8x128xf32>
    %142 = arith.mulf %137, %141 : vector<8x128xf32>
    %143 = arith.addf %139, %142 : vector<8x128xf32>
    %144 = math.tanh %143 : vector<8x128xf32>
    %cst_44 = arith.constant 1.000000e+00 : f32
    %145 = vector.broadcast %cst_44 : f32 to vector<8x128xf32>
    %146 = arith.subf %145, %138 : vector<8x128xf32>
    %147 = arith.mulf %146, %144 : vector<8x128xf32>
    %148 = arith.mulf %138, %125 : vector<8x128xf32>
    %149 = arith.addf %147, %148 : vector<8x128xf32>
    %c40_45 = arith.constant 40 : index
    %c0_46 = arith.constant 0 : index
    %150 = vector.load %arg7[%c40_45, %c0_46] : memref<64x128xf32, #tpu.memory_space<vmem>>, vector<8x128xf32>
    tpu.vector_store %arg7[%c40_45, %c0_46], %149 {strides = array<i32>} : memref<64x128xf32, #tpu.memory_space<vmem>>, vector<8x128xf32>,
    %c48 = arith.constant 48 : index
    %c0_47 = arith.constant 0 : index
    %151 = vector.load %arg6[%c48, %c0_47] : memref<64x384xf32, #tpu.memory_space<vmem>>, vector<8x384xf32>
    %cst_48 = arith.constant dense<0.000000e+00> : vector<8x384xf32>
    %152 = tpu.matmul %149, %4, %cst_48 {dimension_numbers = #tpu.dot_dimension_numbers<[1], [0], [0], [1], [0, 0, 1, 1], [], []>} : vector<8x128xf32>, vector<128x384xf32>, vector<8x384xf32> -> vector<8x384xf32>
    %153 = vector.extract_strided_slice %151 {offsets = [0, 0], sizes = [8, 256], strides = [1, 1]} : vector<8x384xf32> to vector<8x256xf32>
    %154 = vector.extract_strided_slice %152 {offsets = [0, 0], sizes = [8, 256], strides = [1, 1]} : vector<8x384xf32> to vector<8x256xf32>
    %155 = arith.addf %153, %154 : vector<8x256xf32>
    %156 = arith.negf %155 : vector<8x256xf32>
    %157 = math.exp %156 : vector<8x256xf32>
    %cst_49 = arith.constant 1.000000e+00 : f32
    %158 = vector.broadcast %cst_49 : f32 to vector<8x256xf32>
    %159 = arith.addf %158, %157 : vector<8x256xf32>
    %160 = arith.divf %158, %159 : vector<8x256xf32>
    %161 = vector.extract_strided_slice %160 {offsets = [0, 0], sizes = [8, 128], strides = [1, 1]} : vector<8x256xf32> to vector<8x128xf32>
    %162 = vector.extract_strided_slice %160 {offsets = [0, 128], sizes = [8, 128], strides = [1, 1]} : vector<8x256xf32> to vector<8x128xf32>
    %163 = vector.extract_strided_slice %151 {offsets = [0, 256], sizes = [8, 128], strides = [1, 1]} : vector<8x384xf32> to vector<8x128xf32>
    %164 = vector.extract_strided_slice %152 {offsets = [0, 256], sizes = [8, 128], strides = [1, 1]} : vector<8x384xf32> to vector<8x128xf32>
    %165 = arith.addf %164, %5 : vector<8x128xf32>
    %166 = arith.mulf %161, %165 : vector<8x128xf32>
    %167 = arith.addf %163, %166 : vector<8x128xf32>
    %168 = math.tanh %167 : vector<8x128xf32>
    %cst_50 = arith.constant 1.000000e+00 : f32
    %169 = vector.broadcast %cst_50 : f32 to vector<8x128xf32>
    %170 = arith.subf %169, %162 : vector<8x128xf32>
    %171 = arith.mulf %170, %168 : vector<8x128xf32>
    %172 = arith.mulf %162, %149 : vector<8x128xf32>
    %173 = arith.addf %171, %172 : vector<8x128xf32>
    %c48_51 = arith.constant 48 : index
    %c0_52 = arith.constant 0 : index
    %174 = vector.load %arg7[%c48_51, %c0_52] : memref<64x128xf32, #tpu.memory_space<vmem>>, vector<8x128xf32>
    tpu.vector_store %arg7[%c48_51, %c0_52], %173 {strides = array<i32>} : memref<64x128xf32, #tpu.memory_space<vmem>>, vector<8x128xf32>,
    %c56 = arith.constant 56 : index
    %c0_53 = arith.constant 0 : index
    %175 = vector.load %arg6[%c56, %c0_53] : memref<64x384xf32, #tpu.memory_space<vmem>>, vector<8x384xf32>
    %cst_54 = arith.constant dense<0.000000e+00> : vector<8x384xf32>
    %176 = tpu.matmul %173, %4, %cst_54 {dimension_numbers = #tpu.dot_dimension_numbers<[1], [0], [0], [1], [0, 0, 1, 1], [], []>} : vector<8x128xf32>, vector<128x384xf32>, vector<8x384xf32> -> vector<8x384xf32>
    %177 = vector.extract_strided_slice %175 {offsets = [0, 0], sizes = [8, 256], strides = [1, 1]} : vector<8x384xf32> to vector<8x256xf32>
    %178 = vector.extract_strided_slice %176 {offsets = [0, 0], sizes = [8, 256], strides = [1, 1]} : vector<8x384xf32> to vector<8x256xf32>
    %179 = arith.addf %177, %178 : vector<8x256xf32>
    %180 = arith.negf %179 : vector<8x256xf32>
    %181 = math.exp %180 : vector<8x256xf32>
    %cst_55 = arith.constant 1.000000e+00 : f32
    %182 = vector.broadcast %cst_55 : f32 to vector<8x256xf32>
    %183 = arith.addf %182, %181 : vector<8x256xf32>
    %184 = arith.divf %182, %183 : vector<8x256xf32>
    %185 = vector.extract_strided_slice %184 {offsets = [0, 0], sizes = [8, 128], strides = [1, 1]} : vector<8x256xf32> to vector<8x128xf32>
    %186 = vector.extract_strided_slice %184 {offsets = [0, 128], sizes = [8, 128], strides = [1, 1]} : vector<8x256xf32> to vector<8x128xf32>
    %187 = vector.extract_strided_slice %175 {offsets = [0, 256], sizes = [8, 128], strides = [1, 1]} : vector<8x384xf32> to vector<8x128xf32>
    %188 = vector.extract_strided_slice %176 {offsets = [0, 256], sizes = [8, 128], strides = [1, 1]} : vector<8x384xf32> to vector<8x128xf32>
    %189 = arith.addf %188, %5 : vector<8x128xf32>
    %190 = arith.mulf %185, %189 : vector<8x128xf32>
    %191 = arith.addf %187, %190 : vector<8x128xf32>
    %192 = math.tanh %191 : vector<8x128xf32>
    %cst_56 = arith.constant 1.000000e+00 : f32
    %193 = vector.broadcast %cst_56 : f32 to vector<8x128xf32>
    %194 = arith.subf %193, %186 : vector<8x128xf32>
    %195 = arith.mulf %194, %192 : vector<8x128xf32>
    %196 = arith.mulf %186, %173 : vector<8x128xf32>
    %197 = arith.addf %195, %196 : vector<8x128xf32>
    %c56_57 = arith.constant 56 : index
    %c0_58 = arith.constant 0 : index
    %198 = vector.load %arg7[%c56_57, %c0_58] : memref<64x128xf32, #tpu.memory_space<vmem>>, vector<8x128xf32>
    tpu.vector_store %arg7[%c56_57, %c0_58], %197 {strides = array<i32>} : memref<64x128xf32, #tpu.memory_space<vmem>>, vector<8x128xf32>,
    %c0_59 = arith.constant 0 : index
    %c0_60 = arith.constant 0 : index
    %199 = vector.load %arg7[%c0_59, %c0_60] : memref<64x128xf32, #tpu.memory_space<vmem>>, vector<64x128xf32>
    %c0_61 = arith.constant 0 : index
    %c0_62 = arith.constant 0 : index
    %200 = vector.load %arg4[%c0_61, %c0_62] : memref<128x2xf32, #tpu.memory_space<vmem>>, vector<128x2xf32>
    %cst_63 = arith.constant dense<0.000000e+00> : vector<64x2xf32>
    %201 = tpu.matmul %199, %200, %cst_63 {dimension_numbers = #tpu.dot_dimension_numbers<[1], [0], [0], [1], [0, 0, 1, 1], [], []>} : vector<64x128xf32>, vector<128x2xf32>, vector<64x2xf32> -> vector<64x2xf32>
    %c0_64 = arith.constant 0 : index
    %c0_65 = arith.constant 0 : index
    %202 = vector.load %arg5[%c0_64, %c0_65] : memref<64x2xf32, #tpu.memory_space<vmem>>, vector<64x2xf32>
    tpu.vector_store %arg5[%c0_64, %c0_65], %201 {strides = array<i32>} : memref<64x2xf32, #tpu.memory_space<vmem>>, vector<64x2xf32>,
    return
  }
}

</mosaic_0001>

<llo_original>
// kernel: tpu_custom_call.1
$region0: #{tpu_custom_call.1}
  #allocation0 [shape = 'u32[]', space=smem, size = 0x4, offset = 0x4, fixed_abs, tag = 'smem constant byte address 0x4 - core index']
  #allocation1 [shape = 'u32[72,128]{1,0:T(1,128)}', space=vmem, size = 0x9000, scoped, tag = 'internal scratch']
  #allocation2 [shape = 'f32[64,384]{1,0:T(8,128)}', space=vmem, size = 0x18000, scoped, tag = 'scratch operand']
  #allocation3 [shape = 'f32[64,128]{1,0:T(8,128)}', space=vmem, size = 0x8000, scoped, tag = 'scratch operand']
  %s0 = inlined_call_operand.vmem [shape: f32[64,24], index: 0, kind: input, shape index: {}]
  %s1 = inlined_call_operand.vmem [shape: f32[24,384], index: 1, kind: input, shape index: {}]
  %s2 = inlined_call_operand.hbm [shape: f32[128,384], index: 2, kind: input, shape index: {}]
  %s3 = inlined_call_operand.vmem [shape: f32[8,128], index: 3, kind: input, shape index: {}]
  %s4 = inlined_call_operand.vmem [shape: f32[128,2], index: 4, kind: input, shape index: {}]
  %s5 = inlined_call_operand.vmem [shape: f32[64,2], index: 5, kind: output, shape index: {}]
  %s6 = sld [smem:[#allocation0]]
  $region34: #{tpu_custom_call.1} parent=0
    _
  %s8 = ssub.s32 1, %s6
  %s9 = scalar_select 0, %s8, %s6
  $region1: #{tpu_custom_call.1} parent=0
    #allocation4 [shape = 'u8[196608]{0}', space=vmem, size = 0x30000, scoped, tag = 'input window, operand 2, single buffered']
    #allocation5 [shape = 's32[1]{0}', space=sflag, size = 0x4, scoped, tag = 'scoped memory for tpu_custom_call.1']
    %10 = vsyncpa [#allocation5], 0
    // Predicated region
    $region2: #{tpu_custom_call.1} parent=1 // pred_check
      _
    $region3: #{tpu_custom_call.1} parent=1 // pred_check_branch
      %12 = sbr.rel (0) target = $region5
    $region4: #{tpu_custom_call.1} parent=1 // pred_region
      _
    $region5: #{tpu_custom_call.1} parent=1 // pred_fallthru
      _
    // Predicated region
    $region6: #{tpu_custom_call.1} parent=1 // pred_check
      _
    $region7: #{tpu_custom_call.1} parent=1 // pred_check_branch
      %14 = sbr.rel (0) target = $region9
    $region8: #{tpu_custom_call.1} parent=1 // pred_region
      _
    $region9: #{tpu_custom_call.1} parent=1 // pred_fallthru
      _
    // Predicated region
    $region10: #{tpu_custom_call.1} parent=1 // pred_check
      _
    $region11: #{tpu_custom_call.1} parent=1 // pred_check_branch
      %16 = sbr.rel (0) target = $region13
    $region12: #{tpu_custom_call.1} parent=1 // pred_region
      %18 = vsyncadd [#allocation5], 0
      %s19 = sshll.u32 %s2, 4
      %s20 = int_to_ptr.hbm [resolvable:$true] %s19
      %s21 = sshll.u32 [#allocation4], 4
      %s22 = int_to_ptr.vmem [resolvable:$true] %s21
      %27 = dma.hbm_to_vmem [thread:$0]  %s20, 6144, %s22, [#allocation5], 384, 384, 24
    $region13: #{tpu_custom_call.1} parent=1 // pred_fallthru
      _
    // Predicated region
    $region14: #{tpu_custom_call.1} parent=1 // pred_check
      _
    $region15: #{tpu_custom_call.1} parent=1 // pred_check_branch
      %29 = sbr.rel (0) target = $region17
    $region16: #{tpu_custom_call.1} parent=1 // pred_region
      _
    $region17: #{tpu_custom_call.1} parent=1 // pred_fallthru
      _
    // Predicated region
    $region18: #{tpu_custom_call.1} parent=1 // pred_check
      _
    $region19: #{tpu_custom_call.1} parent=1 // pred_check_branch
      %31 = sbr.rel (0) target = $region21
    $region20: #{tpu_custom_call.1} parent=1 // pred_region
      _
    $region21: #{tpu_custom_call.1} parent=1 // pred_fallthru
      _
    // Predicated region
    $region22: #{tpu_custom_call.1} parent=1 // pred_check
      _
    $region23: #{tpu_custom_call.1} parent=1 // pred_check_branch
      %33 = sbr.rel (0) target = $region25
    $region24: #{tpu_custom_call.1} parent=1 // pred_region
      %35 = dma.done [#allocation5], 6144
    $region25: #{tpu_custom_call.1} parent=1 // pred_fallthru
      _
    %v36 = vld [vmem:[%s0] sm:$0xff]
    %v37 = vld [vmem:[%s0 + $0x8] sm:$0xff]
    %v38 = vld [vmem:[%s0 + $0x10] sm:$0xff]
    %v39 = vld [vmem:[%s0 + $0x18] sm:$0xff]
    %v40 = vld [vmem:[%s0 + $0x20] sm:$0xff]
    %v41 = vld [vmem:[%s0 + $0x28] sm:$0xff]
    %v42 = vld [vmem:[%s0 + $0x30] sm:$0xff]
    %v43 = vld [vmem:[%s0 + $0x38] sm:$0xff]
    %v44 = vld [vmem:[%s1] sm:$0xff]
    %v45 = vld [vmem:[%s1 + $0x8] sm:$0xff]
    %v46 = vld [vmem:[%s1 + $0x10] sm:$0xff]
    %v47 = vld [vmem:[%s1 + $0x18] sm:$0xff]
    %v48 = vld [vmem:[%s1 + $0x20] sm:$0xff]
    %v49 = vld [vmem:[%s1 + $0x28] sm:$0xff]
    %v50 = vld [vmem:[%s1 + $0x30] sm:$0xff]
    %v51 = vld [vmem:[%s1 + $0x38] sm:$0xff]
    %v52 = vld [vmem:[%s1 + $0x40] sm:$0xff]
    %vm53 = vcmask 195584
    %v55 = vsel %vm53, %v36, 0
    %v58 = vsel %vm53, %v37, 0
    %v61 = vsel %vm53, %v38, 0
    %v64 = vsel %vm53, %v39, 0
    %v67 = vsel %vm53, %v40, 0
    %v70 = vsel %vm53, %v41, 0
    %v73 = vsel %vm53, %v42, 0
    %v76 = vsel %vm53, %v43, 0
    %78 = vmatpush.msra.mxu0 0.0
    %79 = vmatpush.msra.mxu0 0.0
    %80 = vmatpush.msra.mxu0 0.0
    %81 = vmatpush.msra.mxu0 0.0
    %82 = vmatpush.msra.mxu0 0.0
    %83 = vmatpush.msra.mxu0 0.0
    %84 = vmatpush.msra.mxu0 0.0
    %85 = vmatpush.msra.mxu0 0.0
    %86 = vmatpush.msra.mxu0 0.0
    %87 = vmatpush.msra.mxu0 0.0
    %88 = vmatpush.msra.mxu0 0.0
    %89 = vmatpush.msra.mxu0 0.0
    %90 = vmatpush.msra.mxu0 0.0
    %91 = vmatpush.msra.mxu0 %v50
    %92 = vmatpush.msra.mxu0 %v47
    %93 = vmatpush.msra.mxu0 %v44
    %94 = vmatmul.f32.gmra.mxu0 %v55
    %v95 = vpop.f32.mrf.mxu0
    %v96 = vadd.f32 0.0, %v95
    %97 = vmatmul.f32.gmra.mxu0 %v58
    %v98 = vpop.f32.mrf.mxu0
    %v99 = vadd.f32 0.0, %v98
    %100 = vmatmul.f32.gmra.mxu0 %v61
    %v101 = vpop.f32.mrf.mxu0
    %v102 = vadd.f32 0.0, %v101
    %103 = vmatmul.f32.gmra.mxu0 %v64
    %v104 = vpop.f32.mrf.mxu0
    %v105 = vadd.f32 0.0, %v104
    %106 = vmatmul.f32.gmra.mxu0 %v67
    %v107 = vpop.f32.mrf.mxu0
    %v108 = vadd.f32 0.0, %v107
    %109 = vmatmul.f32.gmra.mxu0 %v70
    %v110 = vpop.f32.mrf.mxu0
    %v111 = vadd.f32 0.0, %v110
    %112 = vmatmul.f32.gmra.mxu0 %v73
    %v113 = vpop.f32.mrf.mxu0
    %v114 = vadd.f32 0.0, %v113
    %115 = vmatmul.f32.gmra.mxu0 %v76
    %v116 = vpop.f32.mrf.mxu0
    %v117 = vadd.f32 0.0, %v116
    %118 = vdwg.mxu0
    %119 = vmatpush.msra.mxu0 0.0
    %120 = vmatpush.msra.mxu0 0.0
    %121 = vmatpush.msra.mxu0 0.0
    %122 = vmatpush.msra.mxu0 0.0
    %123 = vmatpush.msra.mxu0 0.0
    %124 = vmatpush.msra.mxu0 0.0
    %125 = vmatpush.msra.mxu0 0.0
    %126 = vmatpush.msra.mxu0 0.0
    %127 = vmatpush.msra.mxu0 0.0
    %128 = vmatpush.msra.mxu0 0.0
    %129 = vmatpush.msra.mxu0 0.0
    %130 = vmatpush.msra.mxu0 0.0
    %131 = vmatpush.msra.mxu0 0.0
    %132 = vmatpush.msra.mxu0 %v51
    %133 = vmatpush.msra.mxu0 %v48
    %134 = vmatpush.msra.mxu0 %v45
    %135 = vmatmul.f32.gmra.mxu0 %v55
    %v136 = vpop.f32.mrf.mxu0
    %v137 = vadd.f32 0.0, %v136
    %138 = vmatmul.f32.gmra.mxu0 %v58
    %v139 = vpop.f32.mrf.mxu0
    %v140 = vadd.f32 0.0, %v139
    %141 = vmatmul.f32.gmra.mxu0 %v61
    %v142 = vpop.f32.mrf.mxu0
    %v143 = vadd.f32 0.0, %v142
    %144 = vmatmul.f32.gmra.mxu0 %v64
    %v145 = vpop.f32.mrf.mxu0
    %v146 = vadd.f32 0.0, %v145
    %147 = vmatmul.f32.gmra.mxu0 %v67
    %v148 = vpop.f32.mrf.mxu0
    %v149 = vadd.f32 0.0, %v148
    %150 = vmatmul.f32.gmra.mxu0 %v70
    %v151 = vpop.f32.mrf.mxu0
    %v152 = vadd.f32 0.0, %v151
    %153 = vmatmul.f32.gmra.mxu0 %v73
    %v154 = vpop.f32.mrf.mxu0
    %v155 = vadd.f32 0.0, %v154
    %156 = vmatmul.f32.gmra.mxu0 %v76
    %v157 = vpop.f32.mrf.mxu0
    %v158 = vadd.f32 0.0, %v157
    %159 = vdwg.mxu0
    %160 = vmatpush.msra.mxu0 0.0
    %161 = vmatpush.msra.mxu0 0.0
    %162 = vmatpush.msra.mxu0 0.0
    %163 = vmatpush.msra.mxu0 0.0
    %164 = vmatpush.msra.mxu0 0.0
    %165 = vmatpush.msra.mxu0 0.0
    %166 = vmatpush.msra.mxu0 0.0
    %167 = vmatpush.msra.mxu0 0.0
    %168 = vmatpush.msra.mxu0 0.0
    %169 = vmatpush.msra.mxu0 0.0
    %170 = vmatpush.msra.mxu0 0.0
    %171 = vmatpush.msra.mxu0 0.0
    %172 = vmatpush.msra.mxu0 0.0
    %173 = vmatpush.msra.mxu0 %v52
    %174 = vmatpush.msra.mxu0 %v49
    %175 = vmatpush.msra.mxu0 %v46
    %176 = vmatmul.f32.gmra.mxu0 %v55
    %v177 = vpop.f32.mrf.mxu0
    %v178 = vadd.f32 0.0, %v177
    %179 = vmatmul.f32.gmra.mxu0 %v58
    %v180 = vpop.f32.mrf.mxu0
    %v181 = vadd.f32 0.0, %v180
    %182 = vmatmul.f32.gmra.mxu0 %v61
    %v183 = vpop.f32.mrf.mxu0
    %v184 = vadd.f32 0.0, %v183
    %185 = vmatmul.f32.gmra.mxu0 %v64
    %v186 = vpop.f32.mrf.mxu0
    %v187 = vadd.f32 0.0, %v186
    %188 = vmatmul.f32.gmra.mxu0 %v67
    %v189 = vpop.f32.mrf.mxu0
    %v190 = vadd.f32 0.0, %v189
    %191 = vmatmul.f32.gmra.mxu0 %v70
    %v192 = vpop.f32.mrf.mxu0
    %v193 = vadd.f32 0.0, %v192
    %194 = vmatmul.f32.gmra.mxu0 %v73
    %v195 = vpop.f32.mrf.mxu0
    %v196 = vadd.f32 0.0, %v195
    %197 = vmatmul.f32.gmra.mxu0 %v76
    %v198 = vpop.f32.mrf.mxu0
    %v199 = vadd.f32 0.0, %v198
    %200 = vdwg.mxu0
    %201 = vst [vmem:[#allocation2] sm:$0xff] %v96
    %202 = vst [vmem:[#allocation2 + $0x8] sm:$0xff] %v137
    %203 = vst [vmem:[#allocation2 + $0x10] sm:$0xff] %v178
    %204 = vst [vmem:[#allocation2 + $0x18] sm:$0xff] %v99
    %205 = vst [vmem:[#allocation2 + $0x20] sm:$0xff] %v140
    %206 = vst [vmem:[#allocation2 + $0x28] sm:$0xff] %v181
    %207 = vst [vmem:[#allocation2 + $0x30] sm:$0xff] %v102
    %208 = vst [vmem:[#allocation2 + $0x38] sm:$0xff] %v143
    %209 = vst [vmem:[#allocation2 + $0x40] sm:$0xff] %v184
    %210 = vst [vmem:[#allocation2 + $0x48] sm:$0xff] %v105
    %211 = vst [vmem:[#allocation2 + $0x50] sm:$0xff] %v146
    %212 = vst [vmem:[#allocation2 + $0x58] sm:$0xff] %v187
    %213 = vst [vmem:[#allocation2 + $0x60] sm:$0xff] %v108
    %214 = vst [vmem:[#allocation2 + $0x68] sm:$0xff] %v149
    %215 = vst [vmem:[#allocation2 + $0x70] sm:$0xff] %v190
    %216 = vst [vmem:[#allocation2 + $0x78] sm:$0xff] %v111
    %217 = vst [vmem:[#allocation2 + $0x80] sm:$0xff] %v152
    %218 = vst [vmem:[#allocation2 + $0x88] sm:$0xff] %v193
    %219 = vst [vmem:[#allocation2 + $0x90] sm:$0xff] %v114
    %220 = vst [vmem:[#allocation2 + $0x98] sm:$0xff] %v155
    %221 = vst [vmem:[#allocation2 + $0xa0] sm:$0xff] %v196
    %222 = vst [vmem:[#allocation2 + $0xa8] sm:$0xff] %v117
    %223 = vst [vmem:[#allocation2 + $0xb0] sm:$0xff] %v158
    %224 = vst [vmem:[#allocation2 + $0xb8] sm:$0xff] %v199
    %v225 = vld [vmem:[#allocation4] sm:$0xff]
    %v226 = vld [vmem:[#allocation4 + $0x8] sm:$0xff]
    %v227 = vld [vmem:[#allocation4 + $0x10] sm:$0xff]
    %v228 = vld [vmem:[#allocation4 + $0x18] sm:$0xff]
    %v229 = vld [vmem:[#allocation4 + $0x20] sm:$0xff]
    %v230 = vld [vmem:[#allocation4 + $0x28] sm:$0xff]
    %v231 = vld [vmem:[#allocation4 + $0x30] sm:$0xff]
    %v232 = vld [vmem:[#allocation4 + $0x38] sm:$0xff]
    %v233 = vld [vmem:[#allocation4 + $0x40] sm:$0xff]
    %v234 = vld [vmem:[#allocation4 + $0x48] sm:$0xff]
    %v235 = vld [vmem:[#allocation4 + $0x50] sm:$0xff]
    %v236 = vld [vmem:[#allocation4 + $0x58] sm:$0xff]
    %v237 = vld [vmem:[#allocation4 + $0x60] sm:$0xff]
    %v238 = vld [vmem:[#allocation4 + $0x68] sm:$0xff]
    %v239 = vld [vmem:[#allocation4 + $0x70] sm:$0xff]
    %v240 = vld [vmem:[#allocation4 + $0x78] sm:$0xff]
    %v241 = vld [vmem:[#allocation4 + $0x80] sm:$0xff]
    %v242 = vld [vmem:[#allocation4 + $0x88] sm:$0xff]
    %v243 = vld [vmem:[#allocation4 + $0x90] sm:$0xff]
    %v244 = vld [vmem:[#allocation4 + $0x98] sm:$0xff]
    %v245 = vld [vmem:[#allocation4 + $0xa0] sm:$0xff]
    %v246 = vld [vmem:[#allocation4 + $0xa8] sm:$0xff]
    %v247 = vld [vmem:[#allocation4 + $0xb0] sm:$0xff]
    %v248 = vld [vmem:[#allocation4 + $0xb8] sm:$0xff]
    %v249 = vld [vmem:[#allocation4 + $0xc0] sm:$0xff]
    %v250 = vld [vmem:[#allocation4 + $0xc8] sm:$0xff]
    %v251 = vld [vmem:[#allocation4 + $0xd0] sm:$0xff]
    %v252 = vld [vmem:[#allocation4 + $0xd8] sm:$0xff]
    %v253 = vld [vmem:[#allocation4 + $0xe0] sm:$0xff]
    %v254 = vld [vmem:[#allocation4 + $0xe8] sm:$0xff]
    %v255 = vld [vmem:[#allocation4 + $0xf0] sm:$0xff]
    %v256 = vld [vmem:[#allocation4 + $0xf8] sm:$0xff]
    %v257 = vld [vmem:[#allocation4 + $0x100] sm:$0xff]
    %v258 = vld [vmem:[#allocation4 + $0x108] sm:$0xff]
    %v259 = vld [vmem:[#allocation4 + $0x110] sm:$0xff]
    %v260 = vld [vmem:[#allocation4 + $0x118] sm:$0xff]
    %v261 = vld [vmem:[#allocation4 + $0x120] sm:$0xff]
    %v262 = vld [vmem:[#allocation4 + $0x128] sm:$0xff]
    %v263 = vld [vmem:[#allocation4 + $0x130] sm:$0xff]
    %v264 = vld [vmem:[#allocation4 + $0x138] sm:$0xff]
    %v265 = vld [vmem:[#allocation4 + $0x140] sm:$0xff]
    %v266 = vld [vmem:[#allocation4 + $0x148] sm:$0xff]
    %v267 = vld [vmem:[#allocation4 + $0x150] sm:$0xff]
    %v268 = vld [vmem:[#allocation4 + $0x158] sm:$0xff]
    %v269 = vld [vmem:[#allocation4 + $0x160] sm:$0xff]
    %v270 = vld [vmem:[#allocation4 + $0x168] sm:$0xff]
    %v271 = vld [vmem:[#allocation4 + $0x170] sm:$0xff]
    %v272 = vld [vmem:[#allocation4 + $0x178] sm:$0xff]
    %v273 = vld [vmem:[%s3] sm:$0xff]
    %v274 = vld [vmem:[#allocation2] sm:$0xff]
    %v275 = vld [vmem:[#allocation2 + $0x8] sm:$0xff]
    %v276 = vld [vmem:[#allocation2 + $0x10] sm:$0xff]
    %277 = vmatpush.msra.mxu0 %v270
    %278 = vmatpush.msra.mxu0 %v267
    %279 = vmatpush.msra.mxu0 %v264
    %280 = vmatpush.msra.mxu0 %v261
    %281 = vmatpush.msra.mxu0 %v258
    %282 = vmatpush.msra.mxu0 %v255
    %283 = vmatpush.msra.mxu0 %v252
    %284 = vmatpush.msra.mxu0 %v249
    %285 = vmatpush.msra.mxu0 %v246
    %286 = vmatpush.msra.mxu0 %v243
    %287 = vmatpush.msra.mxu0 %v240
    %288 = vmatpush.msra.mxu0 %v237
    %289 = vmatpush.msra.mxu0 %v234
    %290 = vmatpush.msra.mxu0 %v231
    %291 = vmatpush.msra.mxu0 %v228
    %292 = vmatpush.msra.mxu0 %v225
    %293 = vmatmul.f32.gmra.mxu0 0.0
    %v294 = vpop.f32.mrf.mxu0
    %v295 = vadd.f32 0.0, %v294
    %296 = vdwg.mxu0
    %297 = vmatpush.msra.mxu0 %v271
    %298 = vmatpush.msra.mxu0 %v268
    %299 = vmatpush.msra.mxu0 %v265
    %300 = vmatpush.msra.mxu0 %v262
    %301 = vmatpush.msra.mxu0 %v259
    %302 = vmatpush.msra.mxu0 %v256
    %303 = vmatpush.msra.mxu0 %v253
    %304 = vmatpush.msra.mxu0 %v250
    %305 = vmatpush.msra.mxu0 %v247
    %306 = vmatpush.msra.mxu0 %v244
    %307 = vmatpush.msra.mxu0 %v241
    %308 = vmatpush.msra.mxu0 %v238
    %309 = vmatpush.msra.mxu0 %v235
    %310 = vmatpush.msra.mxu0 %v232
    %311 = vmatpush.msra.mxu0 %v229
    %312 = vmatpush.msra.mxu0 %v226
    %313 = vmatmul.f32.gmra.mxu0 0.0
    %v314 = vpop.f32.mrf.mxu0
    %v315 = vadd.f32 0.0, %v314
    %316 = vdwg.mxu0
    %317 = vmatpush.msra.mxu0 %v272
    %318 = vmatpush.msra.mxu0 %v269
    %319 = vmatpush.msra.mxu0 %v266
    %320 = vmatpush.msra.mxu0 %v263
    %321 = vmatpush.msra.mxu0 %v260
    %322 = vmatpush.msra.mxu0 %v257
    %323 = vmatpush.msra.mxu0 %v254
    %324 = vmatpush.msra.mxu0 %v251
    %325 = vmatpush.msra.mxu0 %v248
    %326 = vmatpush.msra.mxu0 %v245
    %327 = vmatpush.msra.mxu0 %v242
    %328 = vmatpush.msra.mxu0 %v239
    %329 = vmatpush.msra.mxu0 %v236
    %330 = vmatpush.msra.mxu0 %v233
    %331 = vmatpush.msra.mxu0 %v230
    %332 = vmatpush.msra.mxu0 %v227
    %333 = vmatmul.f32.gmra.mxu0 0.0
    %v334 = vpop.f32.mrf.mxu0
    %v335 = vadd.f32 0.0, %v334
    %336 = vdwg.mxu0
    %v337 = vadd.f32 %v274, %v295
    %v338 = vadd.f32 %v275, %v315
    %v339 = vxor.u32 %v337, 2147483648
    %v340 = vxor.u32 %v338, 2147483648
    %v341 = vmul.f32 %v339, 1.442695
    %v342 = vpow.pop %v341
    %v343 = vmul.f32 %v340, 1.442695
    %v344 = vpow.pop %v343
    %v345 = vadd.f32 %v342, 1.0
    %v346 = vadd.f32 %v344, 1.0
    %v347 = vrcp.pop %v345
    %v348 = vmul.f32 %v345, %v347
    %v349 = vsub.f32 1.0, %v348
    %v350 = vmul.f32 %v347, %v349
    %v351 = vadd.f32 %v347, %v350
    %vm352 = vweird.f32 %v345
    %vm353 = vweird.f32 %v347
    %vm354 = vmor %vm352, %vm353
    %v355 = vsel %vm354, %v347, %v351
    %v356 = vand.u32 2147483647, %v345
    %vm357 = vcmp.eq.f32.partialorder %v356, 8.507059e+37
    %v358 = vand.u32 %v345, 2147483648
    %v359 = vor.u32 1.1754944e-38, %v358
    %v360 = vsel %vm357, %v359, %v355
    %v361 = vmul.f32 1.0, %v360
    %v362 = vrcp.pop %v346
    %v363 = vmul.f32 %v346, %v362
    %v364 = vsub.f32 1.0, %v363
    %v365 = vmul.f32 %v362, %v364
    %v366 = vadd.f32 %v362, %v365
    %vm367 = vweird.f32 %v346
    %vm368 = vweird.f32 %v362
    %vm369 = vmor %vm367, %vm368
    %v370 = vsel %vm369, %v362, %v366
    %v371 = vand.u32 2147483647, %v346
    %vm372 = vcmp.eq.f32.partialorder %v371, 8.507059e+37
    %v373 = vand.u32 %v346, 2147483648
    %v374 = vor.u32 1.1754944e-38, %v373
    %v375 = vsel %vm372, %v374, %v370
    %v376 = vmul.f32 1.0, %v375
    %v377 = vadd.f32 %v335, %v273
    %v378 = vmul.f32 %v361, %v377
    %v379 = vadd.f32 %v276, %v378
    %v380 = vtanh.pop %v379
    %v381 = vsub.f32 1.0, %v376
    %v382 = vmul.f32 %v381, %v380
    %v383 = vmul.f32 %v376, 0.0
    %v384 = vadd.f32 %v382, %v383
    %385 = vst [vmem:[#allocation3] sm:$0xff] %v384
    %v386 = vld [vmem:[#allocation2 + $0x18] sm:$0xff]
    %v387 = vld [vmem:[#allocation2 + $0x20] sm:$0xff]
    %v388 = vld [vmem:[#allocation2 + $0x28] sm:$0xff]
    %389 = vmatpush.msra.mxu0 %v270
    %390 = vmatpush.msra.mxu0 %v267
    %391 = vmatpush.msra.mxu0 %v264
    %392 = vmatpush.msra.mxu0 %v261
    %393 = vmatpush.msra.mxu0 %v258
    %394 = vmatpush.msra.mxu0 %v255
    %395 = vmatpush.msra.mxu0 %v252
    %396 = vmatpush.msra.mxu0 %v249
    %397 = vmatpush.msra.mxu0 %v246
    %398 = vmatpush.msra.mxu0 %v243
    %399 = vmatpush.msra.mxu0 %v240
    %400 = vmatpush.msra.mxu0 %v237
    %401 = vmatpush.msra.mxu0 %v234
    %402 = vmatpush.msra.mxu0 %v231
    %403 = vmatpush.msra.mxu0 %v228
    %404 = vmatpush.msra.mxu0 %v225
    %405 = vmatmul.f32.gmra.mxu0 %v384
    %v406 = vpop.f32.mrf.mxu0
    %v407 = vadd.f32 0.0, %v406
    %408 = vdwg.mxu0
    %409 = vmatpush.msra.mxu0 %v271
    %410 = vmatpush.msra.mxu0 %v268
    %411 = vmatpush.msra.mxu0 %v265
    %412 = vmatpush.msra.mxu0 %v262
    %413 = vmatpush.msra.mxu0 %v259
    %414 = vmatpush.msra.mxu0 %v256
    %415 = vmatpush.msra.mxu0 %v253
    %416 = vmatpush.msra.mxu0 %v250
    %417 = vmatpush.msra.mxu0 %v247
    %418 = vmatpush.msra.mxu0 %v244
    %419 = vmatpush.msra.mxu0 %v241
    %420 = vmatpush.msra.mxu0 %v238
    %421 = vmatpush.msra.mxu0 %v235
    %422 = vmatpush.msra.mxu0 %v232
    %423 = vmatpush.msra.mxu0 %v229
    %424 = vmatpush.msra.mxu0 %v226
    %425 = vmatmul.f32.gmra.mxu0 %v384
    %v426 = vpop.f32.mrf.mxu0
    %v427 = vadd.f32 0.0, %v426
    %428 = vdwg.mxu0
    %429 = vmatpush.msra.mxu0 %v272
    %430 = vmatpush.msra.mxu0 %v269
    %431 = vmatpush.msra.mxu0 %v266
    %432 = vmatpush.msra.mxu0 %v263
    %433 = vmatpush.msra.mxu0 %v260
    %434 = vmatpush.msra.mxu0 %v257
    %435 = vmatpush.msra.mxu0 %v254
    %436 = vmatpush.msra.mxu0 %v251
    %437 = vmatpush.msra.mxu0 %v248
    %438 = vmatpush.msra.mxu0 %v245
    %439 = vmatpush.msra.mxu0 %v242
    %440 = vmatpush.msra.mxu0 %v239
    %441 = vmatpush.msra.mxu0 %v236
    %442 = vmatpush.msra.mxu0 %v233
    %443 = vmatpush.msra.mxu0 %v230
    %444 = vmatpush.msra.mxu0 %v227
    %445 = vmatmul.f32.gmra.mxu0 %v384
    %v446 = vpop.f32.mrf.mxu0
    %v447 = vadd.f32 0.0, %v446
    %448 = vdwg.mxu0
    %v449 = vadd.f32 %v386, %v407
    %v450 = vadd.f32 %v387, %v427
    %v451 = vxor.u32 %v449, 2147483648
    %v452 = vxor.u32 %v450, 2147483648
    %v453 = vmul.f32 %v451, 1.442695
    %v454 = vpow.pop %v453
    %v455 = vmul.f32 %v452, 1.442695
    %v456 = vpow.pop %v455
    %v457 = vadd.f32 %v454, 1.0
    %v458 = vadd.f32 %v456, 1.0
    %v459 = vrcp.pop %v457
    %v460 = vmul.f32 %v457, %v459
    %v461 = vsub.f32 1.0, %v460
    %v462 = vmul.f32 %v459, %v461
    %v463 = vadd.f32 %v459, %v462
    %vm464 = vweird.f32 %v457
    %vm465 = vweird.f32 %v459
    %vm466 = vmor %vm464, %vm465
    %v467 = vsel %vm466, %v459, %v463
    %v468 = vand.u32 2147483647, %v457
    %vm469 = vcmp.eq.f32.partialorder %v468, 8.507059e+37
    %v470 = vand.u32 %v457, 2147483648
    %v471 = vor.u32 1.1754944e-38, %v470
    %v472 = vsel %vm469, %v471, %v467
    %v473 = vmul.f32 1.0, %v472
    %v474 = vrcp.pop %v458
    %v475 = vmul.f32 %v458, %v474
    %v476 = vsub.f32 1.0, %v475
    %v477 = vmul.f32 %v474, %v476
    %v478 = vadd.f32 %v474, %v477
    %vm479 = vweird.f32 %v458
    %vm480 = vweird.f32 %v474
    %vm481 = vmor %vm479, %vm480
    %v482 = vsel %vm481, %v474, %v478
    %v483 = vand.u32 2147483647, %v458
    %vm484 = vcmp.eq.f32.partialorder %v483, 8.507059e+37
    %v485 = vand.u32 %v458, 2147483648
    %v486 = vor.u32 1.1754944e-38, %v485
    %v487 = vsel %vm484, %v486, %v482
    %v488 = vmul.f32 1.0, %v487
    %v489 = vadd.f32 %v447, %v273
    %v490 = vmul.f32 %v473, %v489
    %v491 = vadd.f32 %v388, %v490
    %v492 = vtanh.pop %v491
    %v493 = vsub.f32 1.0, %v488
    %v494 = vmul.f32 %v493, %v492
    %v495 = vmul.f32 %v488, %v384
    %v496 = vadd.f32 %v494, %v495
    %497 = vst [vmem:[#allocation3 + $0x8] sm:$0xff] %v496
    %v498 = vld [vmem:[#allocation2 + $0x30] sm:$0xff]
    %v499 = vld [vmem:[#allocation2 + $0x38] sm:$0xff]
    %v500 = vld [vmem:[#allocation2 + $0x40] sm:$0xff]
    %501 = vmatpush.msra.mxu0 %v270
    %502 = vmatpush.msra.mxu0 %v267
    %503 = vmatpush.msra.mxu0 %v264
    %504 = vmatpush.msra.mxu0 %v261
    %505 = vmatpush.msra.mxu0 %v258
    %506 = vmatpush.msra.mxu0 %v255
    %507 = vmatpush.msra.mxu0 %v252
    %508 = vmatpush.msra.mxu0 %v249
    %509 = vmatpush.msra.mxu0 %v246
    %510 = vmatpush.msra.mxu0 %v243
    %511 = vmatpush.msra.mxu0 %v240
    %512 = vmatpush.msra.mxu0 %v237
    %513 = vmatpush.msra.mxu0 %v234
    %514 = vmatpush.msra.mxu0 %v231
    %515 = vmatpush.msra.mxu0 %v228
    %516 = vmatpush.msra.mxu0 %v225
    %517 = vmatmul.f32.gmra.mxu0 %v496
    %v518 = vpop.f32.mrf.mxu0
    %v519 = vadd.f32 0.0, %v518
    %520 = vdwg.mxu0
    %521 = vmatpush.msra.mxu0 %v271
    %522 = vmatpush.msra.mxu0 %v268
    %523 = vmatpush.msra.mxu0 %v265
    %524 = vmatpush.msra.mxu0 %v262
    %525 = vmatpush.msra.mxu0 %v259
    %526 = vmatpush.msra.mxu0 %v256
    %527 = vmatpush.msra.mxu0 %v253
    %528 = vmatpush.msra.mxu0 %v250
    %529 = vmatpush.msra.mxu0 %v247
    %530 = vmatpush.msra.mxu0 %v244
    %531 = vmatpush.msra.mxu0 %v241
    %532 = vmatpush.msra.mxu0 %v238
    %533 = vmatpush.msra.mxu0 %v235
    %534 = vmatpush.msra.mxu0 %v232
    %535 = vmatpush.msra.mxu0 %v229
    %536 = vmatpush.msra.mxu0 %v226
    %537 = vmatmul.f32.gmra.mxu0 %v496
    %v538 = vpop.f32.mrf.mxu0
    %v539 = vadd.f32 0.0, %v538
    %540 = vdwg.mxu0
    %541 = vmatpush.msra.mxu0 %v272
    %542 = vmatpush.msra.mxu0 %v269
    %543 = vmatpush.msra.mxu0 %v266
    %544 = vmatpush.msra.mxu0 %v263
    %545 = vmatpush.msra.mxu0 %v260
    %546 = vmatpush.msra.mxu0 %v257
    %547 = vmatpush.msra.mxu0 %v254
    %548 = vmatpush.msra.mxu0 %v251
    %549 = vmatpush.msra.mxu0 %v248
    %550 = vmatpush.msra.mxu0 %v245
    %551 = vmatpush.msra.mxu0 %v242
    %552 = vmatpush.msra.mxu0 %v239
    %553 = vmatpush.msra.mxu0 %v236
    %554 = vmatpush.msra.mxu0 %v233
    %555 = vmatpush.msra.mxu0 %v230
    %556 = vmatpush.msra.mxu0 %v227
    %557 = vmatmul.f32.gmra.mxu0 %v496
    %v558 = vpop.f32.mrf.mxu0
    %v559 = vadd.f32 0.0, %v558
    %560 = vdwg.mxu0
    %v561 = vadd.f32 %v498, %v519
    %v562 = vadd.f32 %v499, %v539
    %v563 = vxor.u32 %v561, 2147483648
    %v564 = vxor.u32 %v562, 2147483648
    %v565 = vmul.f32 %v563, 1.442695
    %v566 = vpow.pop %v565
    %v567 = vmul.f32 %v564, 1.442695
    %v568 = vpow.pop %v567
    %v569 = vadd.f32 %v566, 1.0
    %v570 = vadd.f32 %v568, 1.0
    %v571 = vrcp.pop %v569
    %v572 = vmul.f32 %v569, %v571
    %v573 = vsub.f32 1.0, %v572
    %v574 = vmul.f32 %v571, %v573
    %v575 = vadd.f32 %v571, %v574
    %vm576 = vweird.f32 %v569
    %vm577 = vweird.f32 %v571
    %vm578 = vmor %vm576, %vm577
    %v579 = vsel %vm578, %v571, %v575
    %v580 = vand.u32 2147483647, %v569
    %vm581 = vcmp.eq.f32.partialorder %v580, 8.507059e+37
    %v582 = vand.u32 %v569, 2147483648
    %v583 = vor.u32 1.1754944e-38, %v582
    %v584 = vsel %vm581, %v583, %v579
    %v585 = vmul.f32 1.0, %v584
    %v586 = vrcp.pop %v570
    %v587 = vmul.f32 %v570, %v586
    %v588 = vsub.f32 1.0, %v587
    %v589 = vmul.f32 %v586, %v588
    %v590 = vadd.f32 %v586, %v589
    %vm591 = vweird.f32 %v570
    %vm592 = vweird.f32 %v586
    %vm593 = vmor %vm591, %vm592
    %v594 = vsel %vm593, %v586, %v590
    %v595 = vand.u32 2147483647, %v570
    %vm596 = vcmp.eq.f32.partialorder %v595, 8.507059e+37
    %v597 = vand.u32 %v570, 2147483648
    %v598 = vor.u32 1.1754944e-38, %v597
    %v599 = vsel %vm596, %v598, %v594
    %v600 = vmul.f32 1.0, %v599
    %v601 = vadd.f32 %v559, %v273
    %v602 = vmul.f32 %v585, %v601
    %v603 = vadd.f32 %v500, %v602
    %v604 = vtanh.pop %v603
    %v605 = vsub.f32 1.0, %v600
    %v606 = vmul.f32 %v605, %v604
    %v607 = vmul.f32 %v600, %v496
    %v608 = vadd.f32 %v606, %v607
    %609 = vst [vmem:[#allocation3 + $0x10] sm:$0xff] %v608
    %v610 = vld [vmem:[#allocation2 + $0x48] sm:$0xff]
    %v611 = vld [vmem:[#allocation2 + $0x50] sm:$0xff]
    %v612 = vld [vmem:[#allocation2 + $0x58] sm:$0xff]
    %613 = vmatpush.msra.mxu0 %v270
    %614 = vmatpush.msra.mxu0 %v267
    %615 = vmatpush.msra.mxu0 %v264
    %616 = vmatpush.msra.mxu0 %v261
    %617 = vmatpush.msra.mxu0 %v258
    %618 = vmatpush.msra.mxu0 %v255
    %619 = vmatpush.msra.mxu0 %v252
    %620 = vmatpush.msra.mxu0 %v249
    %621 = vmatpush.msra.mxu0 %v246
    %622 = vmatpush.msra.mxu0 %v243
    %623 = vmatpush.msra.mxu0 %v240
    %624 = vmatpush.msra.mxu0 %v237
    %625 = vmatpush.msra.mxu0 %v234
    %626 = vmatpush.msra.mxu0 %v231
    %627 = vmatpush.msra.mxu0 %v228
    %628 = vmatpush.msra.mxu0 %v225
    %629 = vmatmul.f32.gmra.mxu0 %v608
    %v630 = vpop.f32.mrf.mxu0
    %v631 = vadd.f32 0.0, %v630
    %632 = vdwg.mxu0
    %633 = vmatpush.msra.mxu0 %v271
    %634 = vmatpush.msra.mxu0 %v268
    %635 = vmatpush.msra.mxu0 %v265
    %636 = vmatpush.msra.mxu0 %v262
    %637 = vmatpush.msra.mxu0 %v259
    %638 = vmatpush.msra.mxu0 %v256
    %639 = vmatpush.msra.mxu0 %v253
    %640 = vmatpush.msra.mxu0 %v250
    %641 = vmatpush.msra.mxu0 %v247
    %642 = vmatpush.msra.mxu0 %v244
    %643 = vmatpush.msra.mxu0 %v241
    %644 = vmatpush.msra.mxu0 %v238
    %645 = vmatpush.msra.mxu0 %v235
    %646 = vmatpush.msra.mxu0 %v232
    %647 = vmatpush.msra.mxu0 %v229
    %648 = vmatpush.msra.mxu0 %v226
    %649 = vmatmul.f32.gmra.mxu0 %v608
    %v650 = vpop.f32.mrf.mxu0
    %v651 = vadd.f32 0.0, %v650
    %652 = vdwg.mxu0
    %653 = vmatpush.msra.mxu0 %v272
    %654 = vmatpush.msra.mxu0 %v269
    %655 = vmatpush.msra.mxu0 %v266
    %656 = vmatpush.msra.mxu0 %v263
    %657 = vmatpush.msra.mxu0 %v260
    %658 = vmatpush.msra.mxu0 %v257
    %659 = vmatpush.msra.mxu0 %v254
    %660 = vmatpush.msra.mxu0 %v251
    %661 = vmatpush.msra.mxu0 %v248
    %662 = vmatpush.msra.mxu0 %v245
    %663 = vmatpush.msra.mxu0 %v242
    %664 = vmatpush.msra.mxu0 %v239
    %665 = vmatpush.msra.mxu0 %v236
    %666 = vmatpush.msra.mxu0 %v233
    %667 = vmatpush.msra.mxu0 %v230
    %668 = vmatpush.msra.mxu0 %v227
    %669 = vmatmul.f32.gmra.mxu0 %v608
    %v670 = vpop.f32.mrf.mxu0
    %v671 = vadd.f32 0.0, %v670
    %672 = vdwg.mxu0
    %v673 = vadd.f32 %v610, %v631
    %v674 = vadd.f32 %v611, %v651
    %v675 = vxor.u32 %v673, 2147483648
    %v676 = vxor.u32 %v674, 2147483648
    %v677 = vmul.f32 %v675, 1.442695
    %v678 = vpow.pop %v677
    %v679 = vmul.f32 %v676, 1.442695
    %v680 = vpow.pop %v679
    %v681 = vadd.f32 %v678, 1.0
    %v682 = vadd.f32 %v680, 1.0
    %v683 = vrcp.pop %v681
    %v684 = vmul.f32 %v681, %v683
    %v685 = vsub.f32 1.0, %v684
    %v686 = vmul.f32 %v683, %v685
    %v687 = vadd.f32 %v683, %v686
    %vm688 = vweird.f32 %v681
    %vm689 = vweird.f32 %v683
    %vm690 = vmor %vm688, %vm689
    %v691 = vsel %vm690, %v683, %v687
    %v692 = vand.u32 2147483647, %v681
    %vm693 = vcmp.eq.f32.partialorder %v692, 8.507059e+37
    %v694 = vand.u32 %v681, 2147483648
    %v695 = vor.u32 1.1754944e-38, %v694
    %v696 = vsel %vm693, %v695, %v691
    %v697 = vmul.f32 1.0, %v696
    %v698 = vrcp.pop %v682
    %v699 = vmul.f32 %v682, %v698
    %v700 = vsub.f32 1.0, %v699
    %v701 = vmul.f32 %v698, %v700
    %v702 = vadd.f32 %v698, %v701
    %vm703 = vweird.f32 %v682
    %vm704 = vweird.f32 %v698
    %vm705 = vmor %vm703, %vm704
    %v706 = vsel %vm705, %v698, %v702
    %v707 = vand.u32 2147483647, %v682
    %vm708 = vcmp.eq.f32.partialorder %v707, 8.507059e+37
    %v709 = vand.u32 %v682, 2147483648
    %v710 = vor.u32 1.1754944e-38, %v709
    %v711 = vsel %vm708, %v710, %v706
    %v712 = vmul.f32 1.0, %v711
    %v713 = vadd.f32 %v671, %v273
    %v714 = vmul.f32 %v697, %v713
    %v715 = vadd.f32 %v612, %v714
    %v716 = vtanh.pop %v715
    %v717 = vsub.f32 1.0, %v712
    %v718 = vmul.f32 %v717, %v716
    %v719 = vmul.f32 %v712, %v608
    %v720 = vadd.f32 %v718, %v719
    %721 = vst [vmem:[#allocation3 + $0x18] sm:$0xff] %v720
    %v722 = vld [vmem:[#allocation2 + $0x60] sm:$0xff]
    %v723 = vld [vmem:[#allocation2 + $0x68] sm:$0xff]
    %v724 = vld [vmem:[#allocation2 + $0x70] sm:$0xff]
    %725 = vmatpush.msra.mxu0 %v270
    %726 = vmatpush.msra.mxu0 %v267
    %727 = vmatpush.msra.mxu0 %v264
    %728 = vmatpush.msra.mxu0 %v261
    %729 = vmatpush.msra.mxu0 %v258
    %730 = vmatpush.msra.mxu0 %v255
    %731 = vmatpush.msra.mxu0 %v252
    %732 = vmatpush.msra.mxu0 %v249
    %733 = vmatpush.msra.mxu0 %v246
    %734 = vmatpush.msra.mxu0 %v243
    %735 = vmatpush.msra.mxu0 %v240
    %736 = vmatpush.msra.mxu0 %v237
    %737 = vmatpush.msra.mxu0 %v234
    %738 = vmatpush.msra.mxu0 %v231
    %739 = vmatpush.msra.mxu0 %v228
    %740 = vmatpush.msra.mxu0 %v225
    %741 = vmatmul.f32.gmra.mxu0 %v720
    %v742 = vpop.f32.mrf.mxu0
    %v743 = vadd.f32 0.0, %v742
    %744 = vdwg.mxu0
    %745 = vmatpush.msra.mxu0 %v271
    %746 = vmatpush.msra.mxu0 %v268
    %747 = vmatpush.msra.mxu0 %v265
    %748 = vmatpush.msra.mxu0 %v262
    %749 = vmatpush.msra.mxu0 %v259
    %750 = vmatpush.msra.mxu0 %v256
    %751 = vmatpush.msra.mxu0 %v253
    %752 = vmatpush.msra.mxu0 %v250
    %753 = vmatpush.msra.mxu0 %v247
    %754 = vmatpush.msra.mxu0 %v244
    %755 = vmatpush.msra.mxu0 %v241
    %756 = vmatpush.msra.mxu0 %v238
    %757 = vmatpush.msra.mxu0 %v235
    %758 = vmatpush.msra.mxu0 %v232
    %759 = vmatpush.msra.mxu0 %v229
    %760 = vmatpush.msra.mxu0 %v226
    %761 = vmatmul.f32.gmra.mxu0 %v720
    %v762 = vpop.f32.mrf.mxu0
    %v763 = vadd.f32 0.0, %v762
    %764 = vdwg.mxu0
    %765 = vmatpush.msra.mxu0 %v272
    %766 = vmatpush.msra.mxu0 %v269
    %767 = vmatpush.msra.mxu0 %v266
    %768 = vmatpush.msra.mxu0 %v263
    %769 = vmatpush.msra.mxu0 %v260
    %770 = vmatpush.msra.mxu0 %v257
    %771 = vmatpush.msra.mxu0 %v254
    %772 = vmatpush.msra.mxu0 %v251
    %773 = vmatpush.msra.mxu0 %v248
    %774 = vmatpush.msra.mxu0 %v245
    %775 = vmatpush.msra.mxu0 %v242
    %776 = vmatpush.msra.mxu0 %v239
    %777 = vmatpush.msra.mxu0 %v236
    %778 = vmatpush.msra.mxu0 %v233
    %779 = vmatpush.msra.mxu0 %v230
    %780 = vmatpush.msra.mxu0 %v227
    %781 = vmatmul.f32.gmra.mxu0 %v720
    %v782 = vpop.f32.mrf.mxu0
    %v783 = vadd.f32 0.0, %v782
    %784 = vdwg.mxu0
    %v785 = vadd.f32 %v722, %v743
    %v786 = vadd.f32 %v723, %v763
    %v787 = vxor.u32 %v785, 2147483648
    %v788 = vxor.u32 %v786, 2147483648
    %v789 = vmul.f32 %v787, 1.442695
    %v790 = vpow.pop %v789
    %v791 = vmul.f32 %v788, 1.442695
    %v792 = vpow.pop %v791
    %v793 = vadd.f32 %v790, 1.0
    %v794 = vadd.f32 %v792, 1.0
    %v795 = vrcp.pop %v793
    %v796 = vmul.f32 %v793, %v795
    %v797 = vsub.f32 1.0, %v796
    %v798 = vmul.f32 %v795, %v797
    %v799 = vadd.f32 %v795, %v798
    %vm800 = vweird.f32 %v793
    %vm801 = vweird.f32 %v795
    %vm802 = vmor %vm800, %vm801
    %v803 = vsel %vm802, %v795, %v799
    %v804 = vand.u32 2147483647, %v793
    %vm805 = vcmp.eq.f32.partialorder %v804, 8.507059e+37
    %v806 = vand.u32 %v793, 2147483648
    %v807 = vor.u32 1.1754944e-38, %v806
    %v808 = vsel %vm805, %v807, %v803
    %v809 = vmul.f32 1.0, %v808
    %v810 = vrcp.pop %v794
    %v811 = vmul.f32 %v794, %v810
    %v812 = vsub.f32 1.0, %v811
    %v813 = vmul.f32 %v810, %v812
    %v814 = vadd.f32 %v810, %v813
    %vm815 = vweird.f32 %v794
    %vm816 = vweird.f32 %v810
    %vm817 = vmor %vm815, %vm816
    %v818 = vsel %vm817, %v810, %v814
    %v819 = vand.u32 2147483647, %v794
    %vm820 = vcmp.eq.f32.partialorder %v819, 8.507059e+37
    %v821 = vand.u32 %v794, 2147483648
    %v822 = vor.u32 1.1754944e-38, %v821
    %v823 = vsel %vm820, %v822, %v818
    %v824 = vmul.f32 1.0, %v823
    %v825 = vadd.f32 %v783, %v273
    %v826 = vmul.f32 %v809, %v825
    %v827 = vadd.f32 %v724, %v826
    %v828 = vtanh.pop %v827
    %v829 = vsub.f32 1.0, %v824
    %v830 = vmul.f32 %v829, %v828
    %v831 = vmul.f32 %v824, %v720
    %v832 = vadd.f32 %v830, %v831
    %833 = vst [vmem:[#allocation3 + $0x20] sm:$0xff] %v832
    %v834 = vld [vmem:[#allocation2 + $0x78] sm:$0xff]
    %v835 = vld [vmem:[#allocation2 + $0x80] sm:$0xff]
    %v836 = vld [vmem:[#allocation2 + $0x88] sm:$0xff]
    %837 = vmatpush.msra.mxu0 %v270
    %838 = vmatpush.msra.mxu0 %v267
    %839 = vmatpush.msra.mxu0 %v264
    %840 = vmatpush.msra.mxu0 %v261
    %841 = vmatpush.msra.mxu0 %v258
    %842 = vmatpush.msra.mxu0 %v255
    %843 = vmatpush.msra.mxu0 %v252
    %844 = vmatpush.msra.mxu0 %v249
    %845 = vmatpush.msra.mxu0 %v246
    %846 = vmatpush.msra.mxu0 %v243
    %847 = vmatpush.msra.mxu0 %v240
    %848 = vmatpush.msra.mxu0 %v237
    %849 = vmatpush.msra.mxu0 %v234
    %850 = vmatpush.msra.mxu0 %v231
    %851 = vmatpush.msra.mxu0 %v228
    %852 = vmatpush.msra.mxu0 %v225
    %853 = vmatmul.f32.gmra.mxu0 %v832
    %v854 = vpop.f32.mrf.mxu0
    %v855 = vadd.f32 0.0, %v854
    %856 = vdwg.mxu0
    %857 = vmatpush.msra.mxu0 %v271
    %858 = vmatpush.msra.mxu0 %v268
    %859 = vmatpush.msra.mxu0 %v265
    %860 = vmatpush.msra.mxu0 %v262
    %861 = vmatpush.msra.mxu0 %v259
    %862 = vmatpush.msra.mxu0 %v256
    %863 = vmatpush.msra.mxu0 %v253
    %864 = vmatpush.msra.mxu0 %v250
    %865 = vmatpush.msra.mxu0 %v247
    %866 = vmatpush.msra.mxu0 %v244
    %867 = vmatpush.msra.mxu0 %v241
    %868 = vmatpush.msra.mxu0 %v238
    %869 = vmatpush.msra.mxu0 %v235
    %870 = vmatpush.msra.mxu0 %v232
    %871 = vmatpush.msra.mxu0 %v229
    %872 = vmatpush.msra.mxu0 %v226
    %873 = vmatmul.f32.gmra.mxu0 %v832
    %v874 = vpop.f32.mrf.mxu0
    %v875 = vadd.f32 0.0, %v874
    %876 = vdwg.mxu0
    %877 = vmatpush.msra.mxu0 %v272
    %878 = vmatpush.msra.mxu0 %v269
    %879 = vmatpush.msra.mxu0 %v266
    %880 = vmatpush.msra.mxu0 %v263
    %881 = vmatpush.msra.mxu0 %v260
    %882 = vmatpush.msra.mxu0 %v257
    %883 = vmatpush.msra.mxu0 %v254
    %884 = vmatpush.msra.mxu0 %v251
    %885 = vmatpush.msra.mxu0 %v248
    %886 = vmatpush.msra.mxu0 %v245
    %887 = vmatpush.msra.mxu0 %v242
    %888 = vmatpush.msra.mxu0 %v239
    %889 = vmatpush.msra.mxu0 %v236
    %890 = vmatpush.msra.mxu0 %v233
    %891 = vmatpush.msra.mxu0 %v230
    %892 = vmatpush.msra.mxu0 %v227
    %893 = vmatmul.f32.gmra.mxu0 %v832
    %v894 = vpop.f32.mrf.mxu0
    %v895 = vadd.f32 0.0, %v894
    %896 = vdwg.mxu0
    %v897 = vadd.f32 %v834, %v855
    %v898 = vadd.f32 %v835, %v875
    %v899 = vxor.u32 %v897, 2147483648
    %v900 = vxor.u32 %v898, 2147483648
    %v901 = vmul.f32 %v899, 1.442695
    %v902 = vpow.pop %v901
    %v903 = vmul.f32 %v900, 1.442695
    %v904 = vpow.pop %v903
    %v905 = vadd.f32 %v902, 1.0
    %v906 = vadd.f32 %v904, 1.0
    %v907 = vrcp.pop %v905
    %v908 = vmul.f32 %v905, %v907
    %v909 = vsub.f32 1.0, %v908
    %v910 = vmul.f32 %v907, %v909
    %v911 = vadd.f32 %v907, %v910
    %vm912 = vweird.f32 %v905
    %vm913 = vweird.f32 %v907
    %vm914 = vmor %vm912, %vm913
    %v915 = vsel %vm914, %v907, %v911
    %v916 = vand.u32 2147483647, %v905
    %vm917 = vcmp.eq.f32.partialorder %v916, 8.507059e+37
    %v918 = vand.u32 %v905, 2147483648
    %v919 = vor.u32 1.1754944e-38, %v918
    %v920 = vsel %vm917, %v919, %v915
    %v921 = vmul.f32 1.0, %v920
    %v922 = vrcp.pop %v906
    %v923 = vmul.f32 %v906, %v922
    %v924 = vsub.f32 1.0, %v923
    %v925 = vmul.f32 %v922, %v924
    %v926 = vadd.f32 %v922, %v925
    %vm927 = vweird.f32 %v906
    %vm928 = vweird.f32 %v922
    %vm929 = vmor %vm927, %vm928
    %v930 = vsel %vm929, %v922, %v926
    %v931 = vand.u32 2147483647, %v906
    %vm932 = vcmp.eq.f32.partialorder %v931, 8.507059e+37
    %v933 = vand.u32 %v906, 2147483648
    %v934 = vor.u32 1.1754944e-38, %v933
    %v935 = vsel %vm932, %v934, %v930
    %v936 = vmul.f32 1.0, %v935
    %v937 = vadd.f32 %v895, %v273
    %v938 = vmul.f32 %v921, %v937
    %v939 = vadd.f32 %v836, %v938
    %v940 = vtanh.pop %v939
    %v941 = vsub.f32 1.0, %v936
    %v942 = vmul.f32 %v941, %v940
    %v943 = vmul.f32 %v936, %v832
    %v944 = vadd.f32 %v942, %v943
    %945 = vst [vmem:[#allocation3 + $0x28] sm:$0xff] %v944
    %v946 = vld [vmem:[#allocation2 + $0x90] sm:$0xff]
    %v947 = vld [vmem:[#allocation2 + $0x98] sm:$0xff]
    %v948 = vld [vmem:[#allocation2 + $0xa0] sm:$0xff]
    %949 = vmatpush.msra.mxu0 %v270
    %950 = vmatpush.msra.mxu0 %v267
    %951 = vmatpush.msra.mxu0 %v264
    %952 = vmatpush.msra.mxu0 %v261
    %953 = vmatpush.msra.mxu0 %v258
    %954 = vmatpush.msra.mxu0 %v255
    %955 = vmatpush.msra.mxu0 %v252
    %956 = vmatpush.msra.mxu0 %v249
    %957 = vmatpush.msra.mxu0 %v246
    %958 = vmatpush.msra.mxu0 %v243
    %959 = vmatpush.msra.mxu0 %v240
    %960 = vmatpush.msra.mxu0 %v237
    %961 = vmatpush.msra.mxu0 %v234
    %962 = vmatpush.msra.mxu0 %v231
    %963 = vmatpush.msra.mxu0 %v228
    %964 = vmatpush.msra.mxu0 %v225
    %965 = vmatmul.f32.gmra.mxu0 %v944
    %v966 = vpop.f32.mrf.mxu0
    %v967 = vadd.f32 0.0, %v966
    %968 = vdwg.mxu0
    %969 = vmatpush.msra.mxu0 %v271
    %970 = vmatpush.msra.mxu0 %v268
    %971 = vmatpush.msra.mxu0 %v265
    %972 = vmatpush.msra.mxu0 %v262
    %973 = vmatpush.msra.mxu0 %v259
    %974 = vmatpush.msra.mxu0 %v256
    %975 = vmatpush.msra.mxu0 %v253
    %976 = vmatpush.msra.mxu0 %v250
    %977 = vmatpush.msra.mxu0 %v247
    %978 = vmatpush.msra.mxu0 %v244
    %979 = vmatpush.msra.mxu0 %v241
    %980 = vmatpush.msra.mxu0 %v238
    %981 = vmatpush.msra.mxu0 %v235
    %982 = vmatpush.msra.mxu0 %v232
    %983 = vmatpush.msra.mxu0 %v229
    %984 = vmatpush.msra.mxu0 %v226
    %985 = vmatmul.f32.gmra.mxu0 %v944
    %v986 = vpop.f32.mrf.mxu0
    %v987 = vadd.f32 0.0, %v986
    %988 = vdwg.mxu0
    %989 = vmatpush.msra.mxu0 %v272
    %990 = vmatpush.msra.mxu0 %v269
    %991 = vmatpush.msra.mxu0 %v266
    %992 = vmatpush.msra.mxu0 %v263
    %993 = vmatpush.msra.mxu0 %v260
    %994 = vmatpush.msra.mxu0 %v257
    %995 = vmatpush.msra.mxu0 %v254
    %996 = vmatpush.msra.mxu0 %v251
    %997 = vmatpush.msra.mxu0 %v248
    %998 = vmatpush.msra.mxu0 %v245
    %999 = vmatpush.msra.mxu0 %v242
    %1000 = vmatpush.msra.mxu0 %v239
    %1001 = vmatpush.msra.mxu0 %v236
    %1002 = vmatpush.msra.mxu0 %v233
    %1003 = vmatpush.msra.mxu0 %v230
    %1004 = vmatpush.msra.mxu0 %v227
    %1005 = vmatmul.f32.gmra.mxu0 %v944
    %v1006 = vpop.f32.mrf.mxu0
    %v1007 = vadd.f32 0.0, %v1006
    %1008 = vdwg.mxu0
    %v1009 = vadd.f32 %v946, %v967
    %v1010 = vadd.f32 %v947, %v987
    %v1011 = vxor.u32 %v1009, 2147483648
    %v1012 = vxor.u32 %v1010, 2147483648
    %v1013 = vmul.f32 %v1011, 1.442695
    %v1014 = vpow.pop %v1013
    %v1015 = vmul.f32 %v1012, 1.442695
    %v1016 = vpow.pop %v1015
    %v1017 = vadd.f32 %v1014, 1.0
    %v1018 = vadd.f32 %v1016, 1.0
    %v1019 = vrcp.pop %v1017
    %v1020 = vmul.f32 %v1017, %v1019
    %v1021 = vsub.f32 1.0, %v1020
    %v1022 = vmul.f32 %v1019, %v1021
    %v1023 = vadd.f32 %v1019, %v1022
    %vm1024 = vweird.f32 %v1017
    %vm1025 = vweird.f32 %v1019
    %vm1026 = vmor %vm1024, %vm1025
    %v1027 = vsel %vm1026, %v1019, %v1023
    %v1028 = vand.u32 2147483647, %v1017
    %vm1029 = vcmp.eq.f32.partialorder %v1028, 8.507059e+37
    %v1030 = vand.u32 %v1017, 2147483648
    %v1031 = vor.u32 1.1754944e-38, %v1030
    %v1032 = vsel %vm1029, %v1031, %v1027
    %v1033 = vmul.f32 1.0, %v1032
    %v1034 = vrcp.pop %v1018
    %v1035 = vmul.f32 %v1018, %v1034
    %v1036 = vsub.f32 1.0, %v1035
    %v1037 = vmul.f32 %v1034, %v1036
    %v1038 = vadd.f32 %v1034, %v1037
    %vm1039 = vweird.f32 %v1018
    %vm1040 = vweird.f32 %v1034
    %vm1041 = vmor %vm1039, %vm1040
    %v1042 = vsel %vm1041, %v1034, %v1038
    %v1043 = vand.u32 2147483647, %v1018
    %vm1044 = vcmp.eq.f32.partialorder %v1043, 8.507059e+37
    %v1045 = vand.u32 %v1018, 2147483648
    %v1046 = vor.u32 1.1754944e-38, %v1045
    %v1047 = vsel %vm1044, %v1046, %v1042
    %v1048 = vmul.f32 1.0, %v1047
    %v1049 = vadd.f32 %v1007, %v273
    %v1050 = vmul.f32 %v1033, %v1049
    %v1051 = vadd.f32 %v948, %v1050
    %v1052 = vtanh.pop %v1051
    %v1053 = vsub.f32 1.0, %v1048
    %v1054 = vmul.f32 %v1053, %v1052
    %v1055 = vmul.f32 %v1048, %v944
    %v1056 = vadd.f32 %v1054, %v1055
    %1057 = vst [vmem:[#allocation3 + $0x30] sm:$0xff] %v1056
    %v1058 = vld [vmem:[#allocation2 + $0xa8] sm:$0xff]
    %v1059 = vld [vmem:[#allocation2 + $0xb0] sm:$0xff]
    %v1060 = vld [vmem:[#allocation2 + $0xb8] sm:$0xff]
    %1061 = vmatpush.msra.mxu0 %v270
    %1062 = vmatpush.msra.mxu0 %v267
    %1063 = vmatpush.msra.mxu0 %v264
    %1064 = vmatpush.msra.mxu0 %v261
    %1065 = vmatpush.msra.mxu0 %v258
    %1066 = vmatpush.msra.mxu0 %v255
    %1067 = vmatpush.msra.mxu0 %v252
    %1068 = vmatpush.msra.mxu0 %v249
    %1069 = vmatpush.msra.mxu0 %v246
    %1070 = vmatpush.msra.mxu0 %v243
    %1071 = vmatpush.msra.mxu0 %v240
    %1072 = vmatpush.msra.mxu0 %v237
    %1073 = vmatpush.msra.mxu0 %v234
    %1074 = vmatpush.msra.mxu0 %v231
    %1075 = vmatpush.msra.mxu0 %v228
    %1076 = vmatpush.msra.mxu0 %v225
    %1077 = vmatmul.f32.gmra.mxu0 %v1056
    %v1078 = vpop.f32.mrf.mxu0
    %v1079 = vadd.f32 0.0, %v1078
    %1080 = vdwg.mxu0
    %1081 = vmatpush.msra.mxu0 %v271
    %1082 = vmatpush.msra.mxu0 %v268
    %1083 = vmatpush.msra.mxu0 %v265
    %1084 = vmatpush.msra.mxu0 %v262
    %1085 = vmatpush.msra.mxu0 %v259
    %1086 = vmatpush.msra.mxu0 %v256
    %1087 = vmatpush.msra.mxu0 %v253
    %1088 = vmatpush.msra.mxu0 %v250
    %1089 = vmatpush.msra.mxu0 %v247
    %1090 = vmatpush.msra.mxu0 %v244
    %1091 = vmatpush.msra.mxu0 %v241
    %1092 = vmatpush.msra.mxu0 %v238
    %1093 = vmatpush.msra.mxu0 %v235
    %1094 = vmatpush.msra.mxu0 %v232
    %1095 = vmatpush.msra.mxu0 %v229
    %1096 = vmatpush.msra.mxu0 %v226
    %1097 = vmatmul.f32.gmra.mxu0 %v1056
    %v1098 = vpop.f32.mrf.mxu0
    %v1099 = vadd.f32 0.0, %v1098
    %1100 = vdwg.mxu0
    %1101 = vmatpush.msra.mxu0 %v272
    %1102 = vmatpush.msra.mxu0 %v269
    %1103 = vmatpush.msra.mxu0 %v266
    %1104 = vmatpush.msra.mxu0 %v263
    %1105 = vmatpush.msra.mxu0 %v260
    %1106 = vmatpush.msra.mxu0 %v257
    %1107 = vmatpush.msra.mxu0 %v254
    %1108 = vmatpush.msra.mxu0 %v251
    %1109 = vmatpush.msra.mxu0 %v248
    %1110 = vmatpush.msra.mxu0 %v245
    %1111 = vmatpush.msra.mxu0 %v242
    %1112 = vmatpush.msra.mxu0 %v239
    %1113 = vmatpush.msra.mxu0 %v236
    %1114 = vmatpush.msra.mxu0 %v233
    %1115 = vmatpush.msra.mxu0 %v230
    %1116 = vmatpush.msra.mxu0 %v227
    %1117 = vmatmul.f32.gmra.mxu0 %v1056
    %v1118 = vpop.f32.mrf.mxu0
    %v1119 = vadd.f32 0.0, %v1118
    %1120 = vdwg.mxu0
    %v1121 = vadd.f32 %v1058, %v1079
    %v1122 = vadd.f32 %v1059, %v1099
    %v1123 = vxor.u32 %v1121, 2147483648
    %v1124 = vxor.u32 %v1122, 2147483648
    %v1125 = vmul.f32 %v1123, 1.442695
    %v1126 = vpow.pop %v1125
    %v1127 = vmul.f32 %v1124, 1.442695
    %v1128 = vpow.pop %v1127
    %v1129 = vadd.f32 %v1126, 1.0
    %v1130 = vadd.f32 %v1128, 1.0
    %v1131 = vrcp.pop %v1129
    %v1132 = vmul.f32 %v1129, %v1131
    %v1133 = vsub.f32 1.0, %v1132
    %v1134 = vmul.f32 %v1131, %v1133
    %v1135 = vadd.f32 %v1131, %v1134
    %vm1136 = vweird.f32 %v1129
    %vm1137 = vweird.f32 %v1131
    %vm1138 = vmor %vm1136, %vm1137
    %v1139 = vsel %vm1138, %v1131, %v1135
    %v1140 = vand.u32 2147483647, %v1129
    %vm1141 = vcmp.eq.f32.partialorder %v1140, 8.507059e+37
    %v1142 = vand.u32 %v1129, 2147483648
    %v1143 = vor.u32 1.1754944e-38, %v1142
    %v1144 = vsel %vm1141, %v1143, %v1139
    %v1145 = vmul.f32 1.0, %v1144
    %v1146 = vrcp.pop %v1130
    %v1147 = vmul.f32 %v1130, %v1146
    %v1148 = vsub.f32 1.0, %v1147
    %v1149 = vmul.f32 %v1146, %v1148
    %v1150 = vadd.f32 %v1146, %v1149
    %vm1151 = vweird.f32 %v1130
    %vm1152 = vweird.f32 %v1146
    %vm1153 = vmor %vm1151, %vm1152
    %v1154 = vsel %vm1153, %v1146, %v1150
    %v1155 = vand.u32 2147483647, %v1130
    %vm1156 = vcmp.eq.f32.partialorder %v1155, 8.507059e+37
    %v1157 = vand.u32 %v1130, 2147483648
    %v1158 = vor.u32 1.1754944e-38, %v1157
    %v1159 = vsel %vm1156, %v1158, %v1154
    %v1160 = vmul.f32 1.0, %v1159
    %v1161 = vadd.f32 %v1119, %v273
    %v1162 = vmul.f32 %v1145, %v1161
    %v1163 = vadd.f32 %v1060, %v1162
    %v1164 = vtanh.pop %v1163
    %v1165 = vsub.f32 1.0, %v1160
    %v1166 = vmul.f32 %v1165, %v1164
    %v1167 = vmul.f32 %v1160, %v1056
    %v1168 = vadd.f32 %v1166, %v1167
    %1169 = vst [vmem:[#allocation3 + $0x38] sm:$0xff] %v1168
    %v1170 = vld [vmem:[#allocation3] sm:$0xff]
    %v1171 = vld [vmem:[#allocation3 + $0x8] sm:$0xff]
    %v1172 = vld [vmem:[#allocation3 + $0x10] sm:$0xff]
    %v1173 = vld [vmem:[#allocation3 + $0x18] sm:$0xff]
    %v1174 = vld [vmem:[#allocation3 + $0x20] sm:$0xff]
    %v1175 = vld [vmem:[#allocation3 + $0x28] sm:$0xff]
    %v1176 = vld [vmem:[#allocation3 + $0x30] sm:$0xff]
    %v1177 = vld [vmem:[#allocation3 + $0x38] sm:$0xff]
    %v1178 = vld [vmem:[%s4] sm:$0xff]
    %v1179 = vld [vmem:[%s4 + $0x8] sm:$0xff]
    %v1180 = vld [vmem:[%s4 + $0x10] sm:$0xff]
    %v1181 = vld [vmem:[%s4 + $0x18] sm:$0xff]
    %v1182 = vld [vmem:[%s4 + $0x20] sm:$0xff]
    %v1183 = vld [vmem:[%s4 + $0x28] sm:$0xff]
    %v1184 = vld [vmem:[%s4 + $0x30] sm:$0xff]
    %v1185 = vld [vmem:[%s4 + $0x38] sm:$0xff]
    %v1186 = vld [vmem:[%s4 + $0x40] sm:$0xff]
    %v1187 = vld [vmem:[%s4 + $0x48] sm:$0xff]
    %v1188 = vld [vmem:[%s4 + $0x50] sm:$0xff]
    %v1189 = vld [vmem:[%s4 + $0x58] sm:$0xff]
    %v1190 = vld [vmem:[%s4 + $0x60] sm:$0xff]
    %v1191 = vld [vmem:[%s4 + $0x68] sm:$0xff]
    %v1192 = vld [vmem:[%s4 + $0x70] sm:$0xff]
    %v1193 = vld [vmem:[%s4 + $0x78] sm:$0xff]
    %1194 = vmatpush.msra.mxu0 %v1193
    %1195 = vmatpush.msra.mxu0 %v1192
    %1196 = vmatpush.msra.mxu0 %v1191
    %1197 = vmatpush.msra.mxu0 %v1190
    %1198 = vmatpush.msra.mxu0 %v1189
    %1199 = vmatpush.msra.mxu0 %v1188
    %1200 = vmatpush.msra.mxu0 %v1187
    %1201 = vmatpush.msra.mxu0 %v1186
    %1202 = vmatpush.msra.mxu0 %v1185
    %1203 = vmatpush.msra.mxu0 %v1184
    %1204 = vmatpush.msra.mxu0 %v1183
    %1205 = vmatpush.msra.mxu0 %v1182
    %1206 = vmatpush.msra.mxu0 %v1181
    %1207 = vmatpush.msra.mxu0 %v1180
    %1208 = vmatpush.msra.mxu0 %v1179
    %1209 = vmatpush.msra.mxu0 %v1178
    %1210 = vmatmul.f32.gmra.mxu0 %v1170
    %v1211 = vpop.f32.mrf.mxu0
    %v1212 = vadd.f32 0.0, %v1211
    %1213 = vmatmul.f32.gmra.mxu0 %v1171
    %v1214 = vpop.f32.mrf.mxu0
    %v1215 = vadd.f32 0.0, %v1214
    %1216 = vmatmul.f32.gmra.mxu0 %v1172
    %v1217 = vpop.f32.mrf.mxu0
    %v1218 = vadd.f32 0.0, %v1217
    %1219 = vmatmul.f32.gmra.mxu0 %v1173
    %v1220 = vpop.f32.mrf.mxu0
    %v1221 = vadd.f32 0.0, %v1220
    %1222 = vmatmul.f32.gmra.mxu0 %v1174
    %v1223 = vpop.f32.mrf.mxu0
    %v1224 = vadd.f32 0.0, %v1223
    %1225 = vmatmul.f32.gmra.mxu0 %v1175
    %v1226 = vpop.f32.mrf.mxu0
    %v1227 = vadd.f32 0.0, %v1226
    %1228 = vmatmul.f32.gmra.mxu0 %v1176
    %v1229 = vpop.f32.mrf.mxu0
    %v1230 = vadd.f32 0.0, %v1229
    %1231 = vmatmul.f32.gmra.mxu0 %v1177
    %v1232 = vpop.f32.mrf.mxu0
    %v1233 = vadd.f32 0.0, %v1232
    %1234 = vdwg.mxu0
    %vm1235 = vcmask 15360
    %1236 = vst.msk [vmem:[%s5] sm:$0xff] %vm1235, %v1212
    %1237 = vst.msk [vmem:[%s5 + $0x8] sm:$0xff] %vm1235, %v1215
    %1238 = vst.msk [vmem:[%s5 + $0x10] sm:$0xff] %vm1235, %v1218
    %1239 = vst.msk [vmem:[%s5 + $0x18] sm:$0xff] %vm1235, %v1221
    %1240 = vst.msk [vmem:[%s5 + $0x20] sm:$0xff] %vm1235, %v1224
    %1241 = vst.msk [vmem:[%s5 + $0x28] sm:$0xff] %vm1235, %v1227
    %1242 = vst.msk [vmem:[%s5 + $0x30] sm:$0xff] %vm1235, %v1230
    %1243 = vst.msk [vmem:[%s5 + $0x38] sm:$0xff] %vm1235, %v1233
    // Predicated region
    $region26: #{tpu_custom_call.1} parent=1 // pred_check
      _
    $region27: #{tpu_custom_call.1} parent=1 // pred_check_branch
      %1245 = sbr.rel (0) target = $region29
    $region28: #{tpu_custom_call.1} parent=1 // pred_region
      _
    $region29: #{tpu_custom_call.1} parent=1 // pred_fallthru
      _
    // Predicated region
    $region30: #{tpu_custom_call.1} parent=1 // pred_check
      _
    $region31: #{tpu_custom_call.1} parent=1 // pred_check_branch
      %1247 = sbr.rel (0) target = $region33
    $region32: #{tpu_custom_call.1} parent=1 // pred_region
      _
    $region33: #{tpu_custom_call.1} parent=1 // pred_fallthru
      _
    %1248 = vsyncpa [#allocation5], 1

</llo_original>
